<compile_context>
chip_gen: v7x
topology: tpu7x:2x2x1
jax: 0.10.0
libtpu: 0.0.40
codegen_flags: <defaults>
</compile_context>

<pallas_src>
import functools

import jax
import jax.numpy as jnp
from jax.experimental import pallas as pl
from jax.experimental.pallas import tpu as pltpu


def _layernorm(x, gamma, beta, eps=1e-5):
    # x: (S, D); gamma/beta: (1, D). PyTorch LayerNorm: biased variance, eps=1e-5.
    mean = jnp.mean(x, axis=-1, keepdims=True)
    xc = x - mean
    var = jnp.mean(xc * xc, axis=-1, keepdims=True)
    return xc * jax.lax.rsqrt(var + eps) * gamma + beta


def vit_block_kernel(x_ref, wqkv_ref, bqkv_ref, wo_ref, bo_ref,
                     g1_ref, be1_ref, w1_ref, b1_ref, w2_ref, b2_ref,
                     g2_ref, be2_ref, out_ref, *, nhead):
    f32 = jnp.float32
    cdt = wqkv_ref.dtype                  # MXU compute dtype (bf16); accumulation is f32

    x = x_ref[0].astype(f32)              # (S, D); residual / LN path stays f32
    S, D = x.shape
    dh = D // nhead

    # ---- fused QKV projection: (S, D) @ (D, 3D); Q-scale already folded in ---
    qkv = jnp.dot(x.astype(cdt), wqkv_ref[...],
                  preferred_element_type=f32) + bqkv_ref[...]

    # ---- split heads: (S, D) -> (nhead, S, dh), batch-leading for the MXU ----
    def split_heads(t2d):
        return t2d.reshape(S, nhead, dh).transpose(1, 0, 2)

    q = split_heads(qkv[:, 0 * D:1 * D]).astype(cdt)
    k = split_heads(qkv[:, 1 * D:2 * D]).astype(cdt)
    v = split_heads(qkv[:, 2 * D:3 * D]).astype(cdt)

    # ---- attention: all heads as one batched MXU stream; single f32 buffer ---
    s = jnp.einsum('hqd,hkd->hqk', q, k, preferred_element_type=f32)   # (h, S, S)
    s = jnp.exp(s - jnp.max(s, axis=-1, keepdims=True))
    # approx reciprocal (EUP): ~1e-3 rel error, inside the bf16 tolerance; not
    # bit-matching PyTorch softmax.
    p = (s * pl.reciprocal(jnp.sum(s, axis=-1, keepdims=True), approx=True)).astype(cdt)
    ctx = jnp.einsum('hqk,hkd->hqd', p, v, preferred_element_type=f32)  # (h, S, dh)
    attn = ctx.transpose(1, 0, 2).reshape(S, D)                          # (S, D)

    # output projection (pre-transposed weights: (D, D))
    attn_out = jnp.dot(attn.astype(cdt), wo_ref[...],
                       preferred_element_type=f32) + bo_ref[...]

    # ---- residual + LayerNorm 1 ---------------------------------------------
    y = _layernorm(x + attn_out, g1_ref[...], be1_ref[...])

    # ---- MLP: Linear -> GELU(tanh, EUP) -> Linear ----------------------------
    h1 = jnp.dot(y.astype(cdt), w1_ref[...], preferred_element_type=f32) + b1_ref[...]
    # tanh GELU (EUP slot) instead of exact erf (VALU polynomial); ~1e-3 delta
    # vs nn.GELU()'s default exact form.
    h1 = jax.nn.gelu(h1, approximate=True).astype(cdt)
    h2 = jnp.dot(h1, w2_ref[...], preferred_element_type=f32) + b2_ref[...]

    # ---- residual + LayerNorm 2 ---------------------------------------------
    out = _layernorm(y + h2, g2_ref[...], be2_ref[...])
    out_ref[0] = out.astype(out_ref.dtype)
    # TODO(synk): dropout (attention + MLP) is identity here (eval mode only).


def prepare_params(params, *, nhead, compute_dtype=jnp.bfloat16):
    """One-time weight prep: fold Q scale, transpose, cast matmul weights to bf16."""
    f32 = jnp.float32
    in_w = jnp.asarray(params["in_proj_w"], f32)          # (3D, D), PyTorch layout
    in_b = jnp.asarray(params["in_proj_b"], f32)          # (3D,)
    D = in_w.shape[1]
    assert D % nhead == 0, "hidden_dim must be divisible by nhead"
    dh = D // nhead
    scale = 1.0 / (dh ** 0.5)
    # Fold 1/sqrt(dh) into the Q rows (f32, before the bf16 cast -> no added error).
    qscale = jnp.concatenate([jnp.full((D,), scale, f32), jnp.ones((2 * D,), f32)])
    in_w = in_w * qscale[:, None]
    in_b = in_b * qscale

    row = lambda v: jnp.asarray(v, f32).reshape(1, -1)
    return (
        in_w.T.astype(compute_dtype),                                    # wqkv^T (D, 3D)
        in_b.reshape(1, -1),                                             # bqkv   (1, 3D)
        jnp.asarray(params["out_proj_w"], f32).T.astype(compute_dtype),  # wo^T   (D, D)
        row(params["out_proj_b"]),                                       # bo     (1, D)
        row(params["norm1_w"]), row(params["norm1_b"]),                  # gamma1/beta1
        jnp.asarray(params["lin1_w"], f32).T.astype(compute_dtype),      # w1^T   (D, MLP)
        row(params["lin1_b"]),                                           # b1     (1, MLP)
        jnp.asarray(params["lin2_w"], f32).T.astype(compute_dtype),      # w2^T   (MLP, D)
        row(params["lin2_b"]),                                           # b2     (1, D)
        row(params["norm2_w"]), row(params["norm2_b"]),                  # gamma2/beta2
    )


def _vmem_limit_bytes():
    # Generation-aware scoped-VMEM limit: ~75% of physical per-core VMEM
    # (v7x: ~48 MiB of 64; v5e/v6e: ~96 MiB of 128). Conservative fallback.
    try:
        return (int(pltpu.get_tpu_info().vmem_capacity_bytes) * 3) // 4
    except Exception:
        return 48 * 1024 * 1024


@functools.partial(jax.jit, static_argnames=("nhead",))
def _vit_block_call(x, prepped, *, nhead):
    B, S, D = x.shape
    kernel = functools.partial(vit_block_kernel, nhead=nhead)
    # Grid-invariant operands: untiled whole-array, resident once in VMEM
    # (no multi-buffering, guaranteed single copy).
    wspec = pl.BlockSpec(memory_space=pltpu.MemorySpace.VMEM)
    return pl.pallas_call(
        kernel,
        out_shape=jax.ShapeDtypeStruct((B, S, D), x.dtype),
        grid_spec=pltpu.PrefetchScalarGridSpec(
            num_scalar_prefetch=0,
            grid=(B,),
            in_specs=[pl.BlockSpec((1, S, D), lambda b: (b, 0, 0))] + [wspec] * 12,
            out_specs=pl.BlockSpec((1, S, D), lambda b: (b, 0, 0)),
        ),
        compiler_params=pltpu.CompilerParams(
            dimension_semantics=("parallel",),
            vmem_limit_bytes=_vmem_limit_bytes(),
        ),
    )(x, *prepped)


def vit_block(x, params, *, nhead, compute_dtype=jnp.bfloat16):
    """Runs the fused ViT block. `params` uses PyTorch state-dict layouts."""
    prepped = prepare_params(params, nhead=nhead, compute_dtype=compute_dtype)
    return _vit_block_call(x, prepped, nhead=nhead)


def vit_block_reference(x, params, *, nhead):
    """Pure-JAX f32 reference mirroring PyTorch ViTBlock.forward (eval mode)."""
    B, S, D = x.shape
    dh = D // nhead
    qkv = jnp.einsum('bsd,ed->bse', x, params["in_proj_w"]) + params["in_proj_b"]
    q, k, v = jnp.split(qkv, 3, axis=-1)

    def heads(t):
        return t.reshape(B, S, nhead, dh).transpose(0, 2, 1, 3)

    q, k, v = heads(q), heads(k), heads(v)
    s = jnp.einsum('bhqd,bhkd->bhqk', q, k) / (dh ** 0.5)
    p = jax.nn.softmax(s, axis=-1)
    ctx = jnp.einsum('bhqk,bhkd->bhqd', p, v)
    attn = ctx.transpose(0, 2, 1, 3).reshape(B, S, D)
    attn = attn @ params["out_proj_w"].T + params["out_proj_b"]

    def ln(t, g, b):
        mu = t.mean(-1, keepdims=True)
        var = ((t - mu) ** 2).mean(-1, keepdims=True)
        return (t - mu) / jnp.sqrt(var + 1e-5) * g + b

    y = ln(x + attn, params["norm1_w"], params["norm1_b"])
    h1 = jax.nn.gelu(y @ params["lin1_w"].T + params["lin1_b"], approximate=False)
    m = h1 @ params["lin2_w"].T + params["lin2_b"]
    return ln(y + m, params["norm2_w"], params["norm2_b"])


def init_params(key, hidden_dim, nhead, mlp_dim):
    """Parameters in PyTorch state-dict layout (un-transposed, f32)."""
    D, M = hidden_dim, mlp_dim
    ks = jax.random.split(key, 8)
    s = 0.02
    return {
        "in_proj_w": jax.random.normal(ks[0], (3 * D, D), jnp.float32) * s,
        "in_proj_b": jax.random.normal(ks[1], (3 * D,), jnp.float32) * s,
        "out_proj_w": jax.random.normal(ks[2], (D, D), jnp.float32) * s,
        "out_proj_b": jax.random.normal(ks[3], (D,), jnp.float32) * s,
        "norm1_w": jnp.ones((D,), jnp.float32),
        "norm1_b": jnp.zeros((D,), jnp.float32),
        "lin1_w": jax.random.normal(ks[4], (M, D), jnp.float32) * s,
        "lin1_b": jax.random.normal(ks[5], (M,), jnp.float32) * s,
        "lin2_w": jax.random.normal(ks[6], (D, M), jnp.float32) * s,
        "lin2_b": jax.random.normal(ks[7], (D,), jnp.float32) * s,
        "norm2_w": jnp.ones((D,), jnp.float32),
        "norm2_b": jnp.zeros((D,), jnp.float32),
    }


if __name__ == "__main__":
    # Small, module-consistent shapes: batch=2, seq=8, hidden=32, heads=4, mlp=64.
    # (Benchmark at real ViT sizes, e.g. D=768 — D=32 underfills vregs/MXU.)
    B, S, D, NHEAD, MLP = 2, 8, 32, 4, 64
    key = jax.random.PRNGKey(0)
    kx, kp = jax.random.split(key)
    x = jax.random.normal(kx, (B, S, D), jnp.float32)
    params = init_params(kp, D, NHEAD, MLP)

    out = jax.block_until_ready(vit_block(x, params, nhead=NHEAD))
    assert out.shape == (B, S, D)
    assert bool(jnp.all(jnp.isfinite(out)))

    # bf16 MXU operands + tanh GELU + approx reciprocal vs f32 reference.
    ref = vit_block_reference(x, params, nhead=NHEAD)
    max_err = float(jnp.max(jnp.abs(out - ref)))
    assert max_err < 5e-2, f"kernel deviates from f32 reference: max_err={max_err}"

    print("KERNEL_OK")
</pallas_src>

<mosaic_0001>
module attributes {stable_mosaic.version = 11 : i64} {
  func.func @vit_block_kernel(%arg0: i32, %arg1: memref<1x8x32xf32, #tpu.memory_space<vmem>>, %arg2: memref<32x96xbf16, #tpu.memory_space<vmem>>, %arg3: memref<1x96xf32, #tpu.memory_space<vmem>>, %arg4: memref<32x32xbf16, #tpu.memory_space<vmem>>, %arg5: memref<1x32xf32, #tpu.memory_space<vmem>>, %arg6: memref<1x32xf32, #tpu.memory_space<vmem>>, %arg7: memref<1x32xf32, #tpu.memory_space<vmem>>, %arg8: memref<32x64xbf16, #tpu.memory_space<vmem>>, %arg9: memref<1x64xf32, #tpu.memory_space<vmem>>, %arg10: memref<64x32xbf16, #tpu.memory_space<vmem>>, %arg11: memref<1x32xf32, #tpu.memory_space<vmem>>, %arg12: memref<1x32xf32, #tpu.memory_space<vmem>>, %arg13: memref<1x32xf32, #tpu.memory_space<vmem>>, %arg14: memref<1x8x32xf32, #tpu.memory_space<vmem>>) attributes {dimension_semantics = [#tpu.dimension_semantics<parallel>], iteration_bounds = array<i64: 2>, scalar_prefetch = 0 : i64, scratch_operands = 0 : i64, tpu.core_type = #tpu.core_type<tc>, window_params = [{transform_indices = @transform_0, window_bounds = array<i64: 1, 8, 32>}, {pipeline_mode = #tpu.pipeline_mode<synchronous>, transform_indices = @transform_1, window_bounds = array<i64: 32, 96>}, {pipeline_mode = #tpu.pipeline_mode<synchronous>, transform_indices = @transform_2, window_bounds = array<i64: 1, 96>}, {pipeline_mode = #tpu.pipeline_mode<synchronous>, transform_indices = @transform_3, window_bounds = array<i64: 32, 32>}, {pipeline_mode = #tpu.pipeline_mode<synchronous>, transform_indices = @transform_4, window_bounds = array<i64: 1, 32>}, {pipeline_mode = #tpu.pipeline_mode<synchronous>, transform_indices = @transform_5, window_bounds = array<i64: 1, 32>}, {pipeline_mode = #tpu.pipeline_mode<synchronous>, transform_indices = @transform_6, window_bounds = array<i64: 1, 32>}, {pipeline_mode = #tpu.pipeline_mode<synchronous>, transform_indices = @transform_7, window_bounds = array<i64: 32, 64>}, {pipeline_mode = #tpu.pipeline_mode<synchronous>, transform_indices = @transform_8, window_bounds = array<i64: 1, 64>}, {pipeline_mode = #tpu.pipeline_mode<synchronous>, transform_indices = @transform_9, window_bounds = array<i64: 64, 32>}, {pipeline_mode = #tpu.pipeline_mode<synchronous>, transform_indices = @transform_10, window_bounds = array<i64: 1, 32>}, {pipeline_mode = #tpu.pipeline_mode<synchronous>, transform_indices = @transform_11, window_bounds = array<i64: 1, 32>}, {pipeline_mode = #tpu.pipeline_mode<synchronous>, transform_indices = @transform_12, window_bounds = array<i64: 1, 32>}, {transform_indices = @transform_13, window_bounds = array<i64: 1, 8, 32>}]} {
    %c0 = arith.constant 0 : index
    %c0_0 = arith.constant 0 : index
    %c0_1 = arith.constant 0 : index
    %0 = vector.load %arg1[%c0, %c0_0, %c0_1] : memref<1x8x32xf32, #tpu.memory_space<vmem>>, vector<1x8x32xf32>
    %1 = vector.shape_cast %0 : vector<1x8x32xf32> to vector<8x32xf32>
    %2 = arith.truncf %1 : vector<8x32xf32> to vector<8x32xbf16>
    %c0_2 = arith.constant 0 : index
    %c0_3 = arith.constant 0 : index
    %3 = vector.load %arg2[%c0_2, %c0_3] : memref<32x96xbf16, #tpu.memory_space<vmem>>, vector<32x96xbf16>
    %cst = arith.constant dense<0.000000e+00> : vector<8x96xf32>
    %4 = tpu.matmul %2, %3, %cst {dimension_numbers = #tpu.dot_dimension_numbers<[1], [0], [0], [1], [0, 0, 1, 1], [], []>} : vector<8x32xbf16>, vector<32x96xbf16>, vector<8x96xf32> -> vector<8x96xf32>
    %c0_4 = arith.constant 0 : index
    %c0_5 = arith.constant 0 : index
    %5 = vector.load %arg3[%c0_4, %c0_5] : memref<1x96xf32, #tpu.memory_space<vmem>>, vector<1x96xf32>
    %6 = vector.broadcast %5 : vector<1x96xf32> to vector<8x96xf32>
    %7 = arith.addf %4, %6 : vector<8x96xf32>
    %8 = vector.extract_strided_slice %7 {offsets = [0, 0], sizes = [8, 32], strides = [1, 1]} : vector<8x96xf32> to vector<8x32xf32>
    %9 = vector.shape_cast %8 : vector<8x32xf32> to vector<8x4x8xf32>
    %10 = tpu.transpose %9, [1, 0, 2] : vector<8x4x8xf32> -> vector<4x8x8xf32>
    %11 = arith.truncf %10 : vector<4x8x8xf32> to vector<4x8x8xbf16>
    %12 = vector.extract_strided_slice %7 {offsets = [0, 32], sizes = [8, 32], strides = [1, 1]} : vector<8x96xf32> to vector<8x32xf32>
    %13 = vector.shape_cast %12 : vector<8x32xf32> to vector<8x4x8xf32>
    %14 = tpu.transpose %13, [1, 0, 2] : vector<8x4x8xf32> -> vector<4x8x8xf32>
    %15 = arith.truncf %14 : vector<4x8x8xf32> to vector<4x8x8xbf16>
    %16 = vector.extract_strided_slice %7 {offsets = [0, 64], sizes = [8, 32], strides = [1, 1]} : vector<8x96xf32> to vector<8x32xf32>
    %17 = vector.shape_cast %16 : vector<8x32xf32> to vector<8x4x8xf32>
    %18 = tpu.transpose %17, [1, 0, 2] : vector<8x4x8xf32> -> vector<4x8x8xf32>
    %19 = arith.truncf %18 : vector<4x8x8xf32> to vector<4x8x8xbf16>
    "tpu.trace_start"() <{level = 10 : i32, message = "hqd,hkd->hqk"}> : () -> ()
    %cst_6 = arith.constant dense<0.000000e+00> : vector<4x8x8xf32>
    %20 = tpu.matmul %11, %15, %cst_6 {dimension_numbers = #tpu.dot_dimension_numbers<[2], [2], [1], [1], [0, 0, 0, 1, 1, 1], [0], [0]>} : vector<4x8x8xbf16>, vector<4x8x8xbf16>, vector<4x8x8xf32> -> vector<4x8x8xf32>
    "tpu.trace_stop"() : () -> ()
    %cst_7 = arith.constant dense<0xFF800000> : vector<4x8xf32>
    %21 = vector.multi_reduction <maximumf>, %20, %cst_7 [2] : vector<4x8x8xf32> to vector<4x8xf32>
    %22 = vector.shape_cast %21 : vector<4x8xf32> to vector<4x8x1xf32>
    %23 = vector.broadcast %22 : vector<4x8x1xf32> to vector<4x8x8xf32>
    %24 = arith.subf %20, %23 : vector<4x8x8xf32>
    %25 = math.exp %24 : vector<4x8x8xf32>
    %cst_8 = arith.constant dense<0.000000e+00> : vector<4x8xf32>
    %26 = vector.multi_reduction <add>, %25, %cst_8 [2] : vector<4x8x8xf32> to vector<4x8xf32>
    %27 = vector.shape_cast %26 : vector<4x8xf32> to vector<4x8x1xf32>
    %28 = tpu.reciprocal %27 {approx = true} : vector<4x8x1xf32> -> vector<4x8x1xf32>
    %29 = vector.broadcast %28 : vector<4x8x1xf32> to vector<4x8x8xf32>
    %30 = arith.mulf %25, %29 : vector<4x8x8xf32>
    %31 = arith.truncf %30 : vector<4x8x8xf32> to vector<4x8x8xbf16>
    "tpu.trace_start"() <{level = 10 : i32, message = "hqk,hkd->hqd"}> : () -> ()
    %cst_9 = arith.constant dense<0.000000e+00> : vector<4x8x8xf32>
    %32 = tpu.matmul %31, %19, %cst_9 {dimension_numbers = #tpu.dot_dimension_numbers<[2], [1], [1], [2], [0, 0, 0, 1, 1, 2], [0], [0]>} : vector<4x8x8xbf16>, vector<4x8x8xbf16>, vector<4x8x8xf32> -> vector<4x8x8xf32>
    "tpu.trace_stop"() : () -> ()
    %33 = tpu.transpose %32, [1, 0, 2] : vector<4x8x8xf32> -> vector<8x4x8xf32>
    %34 = vector.shape_cast %33 : vector<8x4x8xf32> to vector<8x32xf32>
    %35 = arith.truncf %34 : vector<8x32xf32> to vector<8x32xbf16>
    %c0_10 = arith.constant 0 : index
    %c0_11 = arith.constant 0 : index
    %36 = vector.load %arg4[%c0_10, %c0_11] : memref<32x32xbf16, #tpu.memory_space<vmem>>, vector<32x32xbf16>
    %cst_12 = arith.constant dense<0.000000e+00> : vector<8x32xf32>
    %37 = tpu.matmul %35, %36, %cst_12 {dimension_numbers = #tpu.dot_dimension_numbers<[1], [0], [0], [1], [0, 0, 1, 1], [], []>} : vector<8x32xbf16>, vector<32x32xbf16>, vector<8x32xf32> -> vector<8x32xf32>
    %c0_13 = arith.constant 0 : index
    %c0_14 = arith.constant 0 : index
    %38 = vector.load %arg5[%c0_13, %c0_14] : memref<1x32xf32, #tpu.memory_space<vmem>>, vector<1x32xf32>
    %39 = vector.broadcast %38 : vector<1x32xf32> to vector<8x32xf32>
    %40 = arith.addf %37, %39 : vector<8x32xf32>
    %41 = arith.addf %1, %40 : vector<8x32xf32>
    %c0_15 = arith.constant 0 : index
    %c0_16 = arith.constant 0 : index
    %42 = vector.load %arg6[%c0_15, %c0_16] : memref<1x32xf32, #tpu.memory_space<vmem>>, vector<1x32xf32>
    %c0_17 = arith.constant 0 : index
    %c0_18 = arith.constant 0 : index
    %43 = vector.load %arg7[%c0_17, %c0_18] : memref<1x32xf32, #tpu.memory_space<vmem>>, vector<1x32xf32>
    %cst_19 = arith.constant dense<0.000000e+00> : vector<8xf32>
    %44 = vector.multi_reduction <add>, %41, %cst_19 [1] : vector<8x32xf32> to vector<8xf32>
    %45 = vector.shape_cast %44 : vector<8xf32> to vector<8x1xf32>
    %cst_20 = arith.constant 3.200000e+01 : f32
    %46 = vector.broadcast %cst_20 : f32 to vector<8x1xf32>
    %47 = arith.divf %45, %46 : vector<8x1xf32>
    %48 = vector.broadcast %47 : vector<8x1xf32> to vector<8x32xf32>
    %49 = arith.subf %41, %48 : vector<8x32xf32>
    %50 = arith.mulf %49, %49 : vector<8x32xf32>
    %cst_21 = arith.constant dense<0.000000e+00> : vector<8xf32>
    %51 = vector.multi_reduction <add>, %50, %cst_21 [1] : vector<8x32xf32> to vector<8xf32>
    %52 = vector.shape_cast %51 : vector<8xf32> to vector<8x1xf32>
    %cst_22 = arith.constant 3.200000e+01 : f32
    %53 = vector.broadcast %cst_22 : f32 to vector<8x1xf32>
    %54 = arith.divf %52, %53 : vector<8x1xf32>
    %cst_23 = arith.constant 9.99999974E-6 : f32
    %55 = vector.broadcast %cst_23 : f32 to vector<8x1xf32>
    %56 = arith.addf %54, %55 : vector<8x1xf32>
    %57 = math.rsqrt %56 : vector<8x1xf32>
    %58 = vector.broadcast %57 : vector<8x1xf32> to vector<8x32xf32>
    %59 = arith.mulf %49, %58 : vector<8x32xf32>
    %60 = vector.broadcast %42 : vector<1x32xf32> to vector<8x32xf32>
    %61 = arith.mulf %59, %60 : vector<8x32xf32>
    %62 = vector.broadcast %43 : vector<1x32xf32> to vector<8x32xf32>
    %63 = arith.addf %61, %62 : vector<8x32xf32>
    %64 = arith.truncf %63 : vector<8x32xf32> to vector<8x32xbf16>
    %c0_24 = arith.constant 0 : index
    %c0_25 = arith.constant 0 : index
    %65 = vector.load %arg8[%c0_24, %c0_25] : memref<32x64xbf16, #tpu.memory_space<vmem>>, vector<32x64xbf16>
    %cst_26 = arith.constant dense<0.000000e+00> : vector<8x64xf32>
    %66 = tpu.matmul %64, %65, %cst_26 {dimension_numbers = #tpu.dot_dimension_numbers<[1], [0], [0], [1], [0, 0, 1, 1], [], []>} : vector<8x32xbf16>, vector<32x64xbf16>, vector<8x64xf32> -> vector<8x64xf32>
    %c0_27 = arith.constant 0 : index
    %c0_28 = arith.constant 0 : index
    %67 = vector.load %arg9[%c0_27, %c0_28] : memref<1x64xf32, #tpu.memory_space<vmem>>, vector<1x64xf32>
    %68 = vector.broadcast %67 : vector<1x64xf32> to vector<8x64xf32>
    %69 = arith.addf %66, %68 : vector<8x64xf32>
    %70 = arith.mulf %69, %69 : vector<8x64xf32>
    %71 = arith.mulf %69, %70 : vector<8x64xf32>
    %cst_29 = arith.constant 4.471500e-02 : f32
    %72 = vector.broadcast %cst_29 : f32 to vector<8x64xf32>
    %73 = arith.mulf %72, %71 : vector<8x64xf32>
    %74 = arith.addf %69, %73 : vector<8x64xf32>
    %cst_30 = arith.constant 0.797884583 : f32
    %75 = vector.broadcast %cst_30 : f32 to vector<8x64xf32>
    %76 = arith.mulf %75, %74 : vector<8x64xf32>
    %77 = math.tanh %76 : vector<8x64xf32>
    %cst_31 = arith.constant 1.000000e+00 : f32
    %78 = vector.broadcast %cst_31 : f32 to vector<8x64xf32>
    %79 = arith.addf %78, %77 : vector<8x64xf32>
    %cst_32 = arith.constant 5.000000e-01 : f32
    %80 = vector.broadcast %cst_32 : f32 to vector<8x64xf32>
    %81 = arith.mulf %80, %79 : vector<8x64xf32>
    %82 = arith.mulf %69, %81 : vector<8x64xf32>
    %83 = arith.truncf %82 : vector<8x64xf32> to vector<8x64xbf16>
    %c0_33 = arith.constant 0 : index
    %c0_34 = arith.constant 0 : index
    %84 = vector.load %arg10[%c0_33, %c0_34] : memref<64x32xbf16, #tpu.memory_space<vmem>>, vector<64x32xbf16>
    %cst_35 = arith.constant dense<0.000000e+00> : vector<8x32xf32>
    %85 = tpu.matmul %83, %84, %cst_35 {dimension_numbers = #tpu.dot_dimension_numbers<[1], [0], [0], [1], [0, 0, 1, 1], [], []>} : vector<8x64xbf16>, vector<64x32xbf16>, vector<8x32xf32> -> vector<8x32xf32>
    %c0_36 = arith.constant 0 : index
    %c0_37 = arith.constant 0 : index
    %86 = vector.load %arg11[%c0_36, %c0_37] : memref<1x32xf32, #tpu.memory_space<vmem>>, vector<1x32xf32>
    %87 = vector.broadcast %86 : vector<1x32xf32> to vector<8x32xf32>
    %88 = arith.addf %85, %87 : vector<8x32xf32>
    %89 = arith.addf %63, %88 : vector<8x32xf32>
    %c0_38 = arith.constant 0 : index
    %c0_39 = arith.constant 0 : index
    %90 = vector.load %arg12[%c0_38, %c0_39] : memref<1x32xf32, #tpu.memory_space<vmem>>, vector<1x32xf32>
    %c0_40 = arith.constant 0 : index
    %c0_41 = arith.constant 0 : index
    %91 = vector.load %arg13[%c0_40, %c0_41] : memref<1x32xf32, #tpu.memory_space<vmem>>, vector<1x32xf32>
    %cst_42 = arith.constant dense<0.000000e+00> : vector<8xf32>
    %92 = vector.multi_reduction <add>, %89, %cst_42 [1] : vector<8x32xf32> to vector<8xf32>
    %93 = vector.shape_cast %92 : vector<8xf32> to vector<8x1xf32>
    %cst_43 = arith.constant 3.200000e+01 : f32
    %94 = vector.broadcast %cst_43 : f32 to vector<8x1xf32>
    %95 = arith.divf %93, %94 : vector<8x1xf32>
    %96 = vector.broadcast %95 : vector<8x1xf32> to vector<8x32xf32>
    %97 = arith.subf %89, %96 : vector<8x32xf32>
    %98 = arith.mulf %97, %97 : vector<8x32xf32>
    %cst_44 = arith.constant dense<0.000000e+00> : vector<8xf32>
    %99 = vector.multi_reduction <add>, %98, %cst_44 [1] : vector<8x32xf32> to vector<8xf32>
    %100 = vector.shape_cast %99 : vector<8xf32> to vector<8x1xf32>
    %cst_45 = arith.constant 3.200000e+01 : f32
    %101 = vector.broadcast %cst_45 : f32 to vector<8x1xf32>
    %102 = arith.divf %100, %101 : vector<8x1xf32>
    %cst_46 = arith.constant 9.99999974E-6 : f32
    %103 = vector.broadcast %cst_46 : f32 to vector<8x1xf32>
    %104 = arith.addf %102, %103 : vector<8x1xf32>
    %105 = math.rsqrt %104 : vector<8x1xf32>
    %106 = vector.broadcast %105 : vector<8x1xf32> to vector<8x32xf32>
    %107 = arith.mulf %97, %106 : vector<8x32xf32>
    %108 = vector.broadcast %90 : vector<1x32xf32> to vector<8x32xf32>
    %109 = arith.mulf %107, %108 : vector<8x32xf32>
    %110 = vector.broadcast %91 : vector<1x32xf32> to vector<8x32xf32>
    %111 = arith.addf %109, %110 : vector<8x32xf32>
    %c0_47 = arith.constant 0 : index
    %c0_48 = arith.constant 0 : index
    %c0_49 = arith.constant 0 : index
    %112 = vector.load %arg14[%c0_47, %c0_48, %c0_49] : memref<1x8x32xf32, #tpu.memory_space<vmem>>, vector<1x8x32xf32>
    %113 = vector.shape_cast %112 : vector<1x8x32xf32> to vector<8x32xf32>
    %114 = vector.shape_cast %111 : vector<8x32xf32> to vector<1x8x32xf32>
    tpu.vector_store %arg14[%c0_47, %c0_48, %c0_49], %114 {strides = array<i32>} : memref<1x8x32xf32, #tpu.memory_space<vmem>>, vector<1x8x32xf32>,
    return
  }
  func.func @transform_0(%arg0: i32) -> (i32, i32, i32) {
    %c0_i32 = arith.constant 0 : i32
    %c0_i32_0 = arith.constant 0 : i32
    %c0_i32_1 = arith.constant 0 : i32
    return %arg0, %c0_i32, %c0_i32_0 : i32, i32, i32
  }
  func.func @transform_1(%arg0: i32) -> (i32, i32) {
    %c0_i32 = arith.constant 0 : i32
    %c0_i32_0 = arith.constant 0 : i32
    %c0_i32_1 = arith.constant 0 : i32
    return %c0_i32, %c0_i32_0 : i32, i32
  }
  func.func @transform_2(%arg0: i32) -> (i32, i32) {
    %c0_i32 = arith.constant 0 : i32
    %c0_i32_0 = arith.constant 0 : i32
    %c0_i32_1 = arith.constant 0 : i32
    return %c0_i32, %c0_i32_0 : i32, i32
  }
  func.func @transform_3(%arg0: i32) -> (i32, i32) {
    %c0_i32 = arith.constant 0 : i32
    %c0_i32_0 = arith.constant 0 : i32
    %c0_i32_1 = arith.constant 0 : i32
    return %c0_i32, %c0_i32_0 : i32, i32
  }
  func.func @transform_4(%arg0: i32) -> (i32, i32) {
    %c0_i32 = arith.constant 0 : i32
    %c0_i32_0 = arith.constant 0 : i32
    %c0_i32_1 = arith.constant 0 : i32
    return %c0_i32, %c0_i32_0 : i32, i32
  }
  func.func @transform_5(%arg0: i32) -> (i32, i32) {
    %c0_i32 = arith.constant 0 : i32
    %c0_i32_0 = arith.constant 0 : i32
    %c0_i32_1 = arith.constant 0 : i32
    return %c0_i32, %c0_i32_0 : i32, i32
  }
  func.func @transform_6(%arg0: i32) -> (i32, i32) {
    %c0_i32 = arith.constant 0 : i32
    %c0_i32_0 = arith.constant 0 : i32
    %c0_i32_1 = arith.constant 0 : i32
    return %c0_i32, %c0_i32_0 : i32, i32
  }
  func.func @transform_7(%arg0: i32) -> (i32, i32) {
    %c0_i32 = arith.constant 0 : i32
    %c0_i32_0 = arith.constant 0 : i32
    %c0_i32_1 = arith.constant 0 : i32
    return %c0_i32, %c0_i32_0 : i32, i32
  }
  func.func @transform_8(%arg0: i32) -> (i32, i32) {
    %c0_i32 = arith.constant 0 : i32
    %c0_i32_0 = arith.constant 0 : i32
    %c0_i32_1 = arith.constant 0 : i32
    return %c0_i32, %c0_i32_0 : i32, i32
  }
  func.func @transform_9(%arg0: i32) -> (i32, i32) {
    %c0_i32 = arith.constant 0 : i32
    %c0_i32_0 = arith.constant 0 : i32
    %c0_i32_1 = arith.constant 0 : i32
    return %c0_i32, %c0_i32_0 : i32, i32
  }
  func.func @transform_10(%arg0: i32) -> (i32, i32) {
    %c0_i32 = arith.constant 0 : i32
    %c0_i32_0 = arith.constant 0 : i32
    %c0_i32_1 = arith.constant 0 : i32
    return %c0_i32, %c0_i32_0 : i32, i32
  }
  func.func @transform_11(%arg0: i32) -> (i32, i32) {
    %c0_i32 = arith.constant 0 : i32
    %c0_i32_0 = arith.constant 0 : i32
    %c0_i32_1 = arith.constant 0 : i32
    return %c0_i32, %c0_i32_0 : i32, i32
  }
  func.func @transform_12(%arg0: i32) -> (i32, i32) {
    %c0_i32 = arith.constant 0 : i32
    %c0_i32_0 = arith.constant 0 : i32
    %c0_i32_1 = arith.constant 0 : i32
    return %c0_i32, %c0_i32_0 : i32, i32
  }
  func.func @transform_13(%arg0: i32) -> (i32, i32, i32) {
    %c0_i32 = arith.constant 0 : i32
    %c0_i32_0 = arith.constant 0 : i32
    %c0_i32_1 = arith.constant 0 : i32
    return %arg0, %c0_i32, %c0_i32_0 : i32, i32, i32
  }
}

</mosaic_0001>

<llo_original>
// kernel: _vit_block_call.1
$region0: #{_vit_block_call.1}
  #allocation0 [shape = 'u32[]', space=smem, size = 0x4, offset = 0x4, fixed_abs, tag = 'smem constant byte address 0x4 - core index']
  #allocation1 [shape = 'u32[144,128]{1,0:T(1,128)}', space=vmem, size = 0x12000, scoped, tag = 'internal scratch']
  %s0 = inlined_call_operand.vmem [shape: f32[2,8,32], index: 0, kind: input, shape index: {}]
  %s1 = inlined_call_operand.vmem [shape: bf16[32,96], index: 1, kind: input, shape index: {}]
  %s2 = inlined_call_operand.vmem [shape: f32[1,96], index: 2, kind: input, shape index: {}]
  %s3 = inlined_call_operand.vmem [shape: bf16[32,32], index: 3, kind: input, shape index: {}]
  %s4 = inlined_call_operand.vmem [shape: f32[1,32], index: 4, kind: input, shape index: {}]
  %s5 = inlined_call_operand.vmem [shape: f32[1,32], index: 5, kind: input, shape index: {}]
  %s6 = inlined_call_operand.vmem [shape: f32[1,32], index: 6, kind: input, shape index: {}]
  %s7 = inlined_call_operand.hbm [shape: bf16[32,64], index: 7, kind: input, shape index: {}]
  %s8 = inlined_call_operand.vmem [shape: f32[1,64], index: 8, kind: input, shape index: {}]
  %s9 = inlined_call_operand.vmem [shape: bf16[64,32], index: 9, kind: input, shape index: {}]
  %s10 = inlined_call_operand.vmem [shape: f32[1,32], index: 10, kind: input, shape index: {}]
  %s11 = inlined_call_operand.vmem [shape: f32[1,32], index: 11, kind: input, shape index: {}]
  %s12 = inlined_call_operand.vmem [shape: f32[1,32], index: 12, kind: input, shape index: {}]
  %s13 = inlined_call_operand.hbm [shape: f32[2,8,32], index: 13, kind: output, shape index: {}]
  %s14 = sld [smem:[#allocation0]]
  $region89: #{_vit_block_call.1} parent=0
    _
  %s16 = ssub.s32 1, %s14
  %s17 = scalar_select 0, %s16, %s14
  $region1: #{_vit_block_call.1} parent=0
    #allocation2 [shape = 'u8[8192]{0}', space=vmem, size = 0x2000, scoped, tag = 'input window, operand 7, single buffered']
    #allocation3 [shape = 's32[2]{0}', space=sflag, size = 0x8, scoped, tag = 'scoped memory for _vit_block_call.1']
    #allocation4 [shape = 's32[2]{0}', space=sflag, size = 0x8, scoped, tag = 'scoped memory for _vit_block_call.1']
    #allocation5 [shape = 'u8[8192]{0}', space=vmem, size = 0x2000, scoped, tag = 'output window, operand 0']
    %18 = vsyncpa [#allocation3], 0
    %19 = vsyncpa [#allocation4], 0
    %s20 = scalar_lea.sflag [#allocation4], 1
    %21 = vsyncpa %s20, 0
    loop: start=0, step=1, limit=4
    $region2: #{_vit_block_call.1} parent=1 // loop_pre_header
      _
    $region3: #{_vit_block_call.1} parent=1 // loop_header
      %s23 = sphi 0, %s27
      %p24 = scmp.ge.s32.totalorder %s23, 4
      %s33 = sphi 0, %s35
      %s36 = sphi 0, %s33
      %s37 = sphi 0, %s36
      %s53 = sphi 0, %s37
      %s57 = sphi 0, %s57
      %s59 = sphi 0, %s57
      %s60 = sphi 0, %s59
      %s74 = sphi 0, %s60
      %s78 = sphi 0, %s78
      %s80 = sphi 0, %s78
      %s81 = sphi 0, %s80
      %s95 = sphi 0, %s81
      %s99 = sphi 0, %s99
      %s101 = sphi 0, %s99
      %s102 = sphi 0, %s101
      %s116 = sphi 0, %s102
      %s120 = sphi 0, %s120
      %s122 = sphi 0, %s120
      %s123 = sphi 0, %s122
      %s137 = sphi 0, %s123
      %s141 = sphi 0, %s141
      %s143 = sphi 0, %s141
      %s144 = sphi 0, %s143
      %s158 = sphi 0, %s144
      %s162 = sphi 0, %s162
      %s164 = sphi 0, %s162
      %s165 = sphi 0, %s164
      %s179 = sphi 0, %s165
      %s183 = sphi 0, %s183
      %s185 = sphi 0, %s183
      %s186 = sphi 0, %s185
      %s200 = sphi 0, %s186
      %s204 = sphi 0, %s204
      %s206 = sphi 0, %s204
      %s207 = sphi 0, %s206
      %s221 = sphi 0, %s207
      %s225 = sphi 0, %s225
      %s227 = sphi 0, %s225
      %s228 = sphi 0, %s227
      %s242 = sphi 0, %s228
      %s246 = sphi 0, %s246
      %s248 = sphi 0, %s246
      %s249 = sphi 0, %s248
      %s263 = sphi 0, %s249
      %s267 = sphi 0, %s267
      %s269 = sphi 0, %s267
      %s270 = sphi 0, %s269
      %s284 = sphi 0, %s270
      %s288 = sphi 0, %s288
      %s290 = sphi 0, %s288
      %s291 = sphi 0, %s290
      %s305 = sphi 0, %s291
      %s311 = sphi 0, %s313
      %s314 = sphi 0, %s311
      %s315 = sphi 0, %s314
      %s331 = sphi 0, %s315
    $region4: #{_vit_block_call.1} parent=1 // loop_header_branch
      %26 = sbr.rel (%p24) target = $region8
    $region5: #{_vit_block_call.1} parent=1 // loop_body
      %s28 = ssub.s32 %s23, 1
      %s29 = ssub.s32 %s23, 2
      %s30 = sadd.s32 %s23, 1
      %s31 = ssub.s32 %s23, %s30
      %p32 = scmp.eq.s32.totalorder %s31, 0
      %s34 = sadd.s32 %s33, 1
      %s35 = scalar_select %p32, %s33, %s34
      %p38 = pneg %p32
      %p39 = scmp.eq.s32.totalorder %s23, 1
      %p40 = por %p38, %p39
      %p41 = scmp.ne.s32.totalorder %s33, %s36
      %p42 = scmp.eq.s32.totalorder %s23, 0
      %p43 = por %p41, %p42
      %p44 = scmp.ne.s32.totalorder %s33, %s36
      %p45 = scmp.eq.s32.totalorder %s28, 1
      %p46 = por %p44, %p45
      %p47 = scmp.ne.s32.totalorder %s36, %s37
      %p48 = scmp.eq.s32.totalorder %s28, 0
      %p49 = por %p47, %p48
      %p50 = scmp.ne.s32.totalorder %s36, %s37
      %p51 = scmp.eq.s32.totalorder %s29, 1
      %p52 = por %p50, %p51
      %p54 = scmp.ne.s32.totalorder %s37, %s53
      %p55 = scmp.eq.s32.totalorder %s29, 0
      %p56 = por %p54, %p55
      %s58 = sadd.s32 %s57, 1
      %p61 = scmp.eq.s32.totalorder %s23, 1
      %p62 = scmp.ne.s32.totalorder %s57, %s59
      %p63 = scmp.eq.s32.totalorder %s23, 0
      %p64 = por %p62, %p63
      %p65 = scmp.ne.s32.totalorder %s57, %s59
      %p66 = scmp.eq.s32.totalorder %s28, 1
      %p67 = por %p65, %p66
      %p68 = scmp.ne.s32.totalorder %s59, %s60
      %p69 = scmp.eq.s32.totalorder %s28, 0
      %p70 = por %p68, %p69
      %p71 = scmp.ne.s32.totalorder %s59, %s60
      %p72 = scmp.eq.s32.totalorder %s29, 1
      %p73 = por %p71, %p72
      %p75 = scmp.ne.s32.totalorder %s60, %s74
      %p76 = scmp.eq.s32.totalorder %s29, 0
      %p77 = por %p75, %p76
      %s79 = sadd.s32 %s78, 1
      %p82 = scmp.eq.s32.totalorder %s23, 1
      %p83 = scmp.ne.s32.totalorder %s78, %s80
      %p84 = scmp.eq.s32.totalorder %s23, 0
      %p85 = por %p83, %p84
      %p86 = scmp.ne.s32.totalorder %s78, %s80
      %p87 = scmp.eq.s32.totalorder %s28, 1
      %p88 = por %p86, %p87
      %p89 = scmp.ne.s32.totalorder %s80, %s81
      %p90 = scmp.eq.s32.totalorder %s28, 0
      %p91 = por %p89, %p90
      %p92 = scmp.ne.s32.totalorder %s80, %s81
      %p93 = scmp.eq.s32.totalorder %s29, 1
      %p94 = por %p92, %p93
      %p96 = scmp.ne.s32.totalorder %s81, %s95
      %p97 = scmp.eq.s32.totalorder %s29, 0
      %p98 = por %p96, %p97
      %s100 = sadd.s32 %s99, 1
      %p103 = scmp.eq.s32.totalorder %s23, 1
      %p104 = scmp.ne.s32.totalorder %s99, %s101
      %p105 = scmp.eq.s32.totalorder %s23, 0
      %p106 = por %p104, %p105
      %p107 = scmp.ne.s32.totalorder %s99, %s101
      %p108 = scmp.eq.s32.totalorder %s28, 1
      %p109 = por %p107, %p108
      %p110 = scmp.ne.s32.totalorder %s101, %s102
      %p111 = scmp.eq.s32.totalorder %s28, 0
      %p112 = por %p110, %p111
      %p113 = scmp.ne.s32.totalorder %s101, %s102
      %p114 = scmp.eq.s32.totalorder %s29, 1
      %p115 = por %p113, %p114
      %p117 = scmp.ne.s32.totalorder %s102, %s116
      %p118 = scmp.eq.s32.totalorder %s29, 0
      %p119 = por %p117, %p118
      %s121 = sadd.s32 %s120, 1
      %p124 = scmp.eq.s32.totalorder %s23, 1
      %p125 = scmp.ne.s32.totalorder %s120, %s122
      %p126 = scmp.eq.s32.totalorder %s23, 0
      %p127 = por %p125, %p126
      %p128 = scmp.ne.s32.totalorder %s120, %s122
      %p129 = scmp.eq.s32.totalorder %s28, 1
      %p130 = por %p128, %p129
      %p131 = scmp.ne.s32.totalorder %s122, %s123
      %p132 = scmp.eq.s32.totalorder %s28, 0
      %p133 = por %p131, %p132
      %p134 = scmp.ne.s32.totalorder %s122, %s123
      %p135 = scmp.eq.s32.totalorder %s29, 1
      %p136 = por %p134, %p135
      %p138 = scmp.ne.s32.totalorder %s123, %s137
      %p139 = scmp.eq.s32.totalorder %s29, 0
      %p140 = por %p138, %p139
      %s142 = sadd.s32 %s141, 1
      %p145 = scmp.eq.s32.totalorder %s23, 1
      %p146 = scmp.ne.s32.totalorder %s141, %s143
      %p147 = scmp.eq.s32.totalorder %s23, 0
      %p148 = por %p146, %p147
      %p149 = scmp.ne.s32.totalorder %s141, %s143
      %p150 = scmp.eq.s32.totalorder %s28, 1
      %p151 = por %p149, %p150
      %p152 = scmp.ne.s32.totalorder %s143, %s144
      %p153 = scmp.eq.s32.totalorder %s28, 0
      %p154 = por %p152, %p153
      %p155 = scmp.ne.s32.totalorder %s143, %s144
      %p156 = scmp.eq.s32.totalorder %s29, 1
      %p157 = por %p155, %p156
      %p159 = scmp.ne.s32.totalorder %s144, %s158
      %p160 = scmp.eq.s32.totalorder %s29, 0
      %p161 = por %p159, %p160
      %s163 = sadd.s32 %s162, 1
      %p166 = scmp.eq.s32.totalorder %s23, 1
      %p167 = scmp.ne.s32.totalorder %s162, %s164
      %p168 = scmp.eq.s32.totalorder %s23, 0
      %p169 = por %p167, %p168
      %p170 = scmp.ne.s32.totalorder %s162, %s164
      %p171 = scmp.eq.s32.totalorder %s28, 1
      %p172 = por %p170, %p171
      %p173 = scmp.ne.s32.totalorder %s164, %s165
      %p174 = scmp.eq.s32.totalorder %s28, 0
      %p175 = por %p173, %p174
      %p176 = scmp.ne.s32.totalorder %s164, %s165
      %p177 = scmp.eq.s32.totalorder %s29, 1
      %p178 = por %p176, %p177
      %p180 = scmp.ne.s32.totalorder %s165, %s179
      %p181 = scmp.eq.s32.totalorder %s29, 0
      %p182 = por %p180, %p181
      %s184 = sadd.s32 %s183, 1
      %p187 = scmp.eq.s32.totalorder %s23, 1
      %p188 = scmp.ne.s32.totalorder %s183, %s185
      %p189 = scmp.eq.s32.totalorder %s23, 0
      %p190 = por %p188, %p189
      %p191 = scmp.ne.s32.totalorder %s183, %s185
      %p192 = scmp.eq.s32.totalorder %s28, 1
      %p193 = por %p191, %p192
      %p194 = scmp.ne.s32.totalorder %s185, %s186
      %p195 = scmp.eq.s32.totalorder %s28, 0
      %p196 = por %p194, %p195
      %p197 = scmp.ne.s32.totalorder %s185, %s186
      %p198 = scmp.eq.s32.totalorder %s29, 1
      %p199 = por %p197, %p198
      %p201 = scmp.ne.s32.totalorder %s186, %s200
      %p202 = scmp.eq.s32.totalorder %s29, 0
      %p203 = por %p201, %p202
      %s205 = sadd.s32 %s204, 1
      %p208 = scmp.eq.s32.totalorder %s23, 1
      %p209 = scmp.ne.s32.totalorder %s204, %s206
      %p210 = scmp.eq.s32.totalorder %s23, 0
      %p211 = por %p209, %p210
      %p212 = scmp.ne.s32.totalorder %s204, %s206
      %p213 = scmp.eq.s32.totalorder %s28, 1
      %p214 = por %p212, %p213
      %p215 = scmp.ne.s32.totalorder %s206, %s207
      %p216 = scmp.eq.s32.totalorder %s28, 0
      %p217 = por %p215, %p216
      %p218 = scmp.ne.s32.totalorder %s206, %s207
      %p219 = scmp.eq.s32.totalorder %s29, 1
      %p220 = por %p218, %p219
      %p222 = scmp.ne.s32.totalorder %s207, %s221
      %p223 = scmp.eq.s32.totalorder %s29, 0
      %p224 = por %p222, %p223
      %s226 = sadd.s32 %s225, 1
      %p229 = scmp.eq.s32.totalorder %s23, 1
      %p230 = scmp.ne.s32.totalorder %s225, %s227
      %p231 = scmp.eq.s32.totalorder %s23, 0
      %p232 = por %p230, %p231
      %p233 = scmp.ne.s32.totalorder %s225, %s227
      %p234 = scmp.eq.s32.totalorder %s28, 1
      %p235 = por %p233, %p234
      %p236 = scmp.ne.s32.totalorder %s227, %s228
      %p237 = scmp.eq.s32.totalorder %s28, 0
      %p238 = por %p236, %p237
      %p239 = scmp.ne.s32.totalorder %s227, %s228
      %p240 = scmp.eq.s32.totalorder %s29, 1
      %p241 = por %p239, %p240
      %p243 = scmp.ne.s32.totalorder %s228, %s242
      %p244 = scmp.eq.s32.totalorder %s29, 0
      %p245 = por %p243, %p244
      %s247 = sadd.s32 %s246, 1
      %p250 = scmp.eq.s32.totalorder %s23, 1
      %p251 = scmp.ne.s32.totalorder %s246, %s248
      %p252 = scmp.eq.s32.totalorder %s23, 0
      %p253 = por %p251, %p252
      %p254 = scmp.ne.s32.totalorder %s246, %s248
      %p255 = scmp.eq.s32.totalorder %s28, 1
      %p256 = por %p254, %p255
      %p257 = scmp.ne.s32.totalorder %s248, %s249
      %p258 = scmp.eq.s32.totalorder %s28, 0
      %p259 = por %p257, %p258
      %p260 = scmp.ne.s32.totalorder %s248, %s249
      %p261 = scmp.eq.s32.totalorder %s29, 1
      %p262 = por %p260, %p261
      %p264 = scmp.ne.s32.totalorder %s249, %s263
      %p265 = scmp.eq.s32.totalorder %s29, 0
      %p266 = por %p264, %p265
      %s268 = sadd.s32 %s267, 1
      %p271 = scmp.eq.s32.totalorder %s23, 1
      %p272 = scmp.ne.s32.totalorder %s267, %s269
      %p273 = scmp.eq.s32.totalorder %s23, 0
      %p274 = por %p272, %p273
      %p275 = scmp.ne.s32.totalorder %s267, %s269
      %p276 = scmp.eq.s32.totalorder %s28, 1
      %p277 = por %p275, %p276
      %p278 = scmp.ne.s32.totalorder %s269, %s270
      %p279 = scmp.eq.s32.totalorder %s28, 0
      %p280 = por %p278, %p279
      %p281 = scmp.ne.s32.totalorder %s269, %s270
      %p282 = scmp.eq.s32.totalorder %s29, 1
      %p283 = por %p281, %p282
      %p285 = scmp.ne.s32.totalorder %s270, %s284
      %p286 = scmp.eq.s32.totalorder %s29, 0
      %p287 = por %p285, %p286
      %s289 = sadd.s32 %s288, 1
      %p292 = scmp.eq.s32.totalorder %s23, 1
      %p293 = scmp.ne.s32.totalorder %s288, %s290
      %p294 = scmp.eq.s32.totalorder %s23, 0
      %p295 = por %p293, %p294
      %p296 = scmp.ne.s32.totalorder %s288, %s290
      %p297 = scmp.eq.s32.totalorder %s28, 1
      %p298 = por %p296, %p297
      %p299 = scmp.ne.s32.totalorder %s290, %s291
      %p300 = scmp.eq.s32.totalorder %s28, 0
      %p301 = por %p299, %p300
      %p302 = scmp.ne.s32.totalorder %s290, %s291
      %p303 = scmp.eq.s32.totalorder %s29, 1
      %p304 = por %p302, %p303
      %p306 = scmp.ne.s32.totalorder %s291, %s305
      %p307 = scmp.eq.s32.totalorder %s29, 0
      %p308 = por %p306, %p307
      %s309 = ssub.s32 %s23, %s30
      %p310 = scmp.eq.s32.totalorder %s309, 0
      %s312 = sadd.s32 %s311, 1
      %s313 = scalar_select %p310, %s311, %s312
      %p316 = pneg %p310
      %p317 = scmp.eq.s32.totalorder %s23, 1
      %p318 = por %p316, %p317
      %p319 = scmp.ne.s32.totalorder %s311, %s314
      %p320 = scmp.eq.s32.totalorder %s23, 0
      %p321 = por %p319, %p320
      %p322 = scmp.ne.s32.totalorder %s311, %s314
      %p323 = scmp.eq.s32.totalorder %s28, 1
      %p324 = por %p322, %p323
      %p325 = scmp.ne.s32.totalorder %s314, %s315
      %p326 = scmp.eq.s32.totalorder %s28, 0
      %p327 = por %p325, %p326
      %p328 = scmp.ne.s32.totalorder %s314, %s315
      %p329 = scmp.eq.s32.totalorder %s29, 1
      %p330 = por %p328, %p329
      %p332 = scmp.ne.s32.totalorder %s315, %s331
      %p333 = scmp.eq.s32.totalorder %s29, 0
      %p334 = por %p332, %p333
      %p335 = scmp.le.s32.totalorder 1, %s23
      %p336 = scmp.lt.s32.totalorder %s23, 3
      %p337 = pnand %p335, %p336
      %p338 = pneg %p337
      // Predicated region
      $region9: #{_vit_block_call.1} parent=5 // pred_check
        _
      $region10: #{_vit_block_call.1} parent=5 // pred_check_branch
        %340 = sbr.rel (%p337) target = $region12
      $region11: #{_vit_block_call.1} parent=5 // pred_region
        %s341 = ssub.s32 %s23, 1
        // Predicated region
        $region13: #{_vit_block_call.1} parent=11 // pred_check
          %p342 = pneg %p70
        $region14: #{_vit_block_call.1} parent=11 // pred_check_branch
          %344 = sbr.rel (%p342) target = $region16
        $region15: #{_vit_block_call.1} parent=11 // pred_region
          _
        $region16: #{_vit_block_call.1} parent=11 // pred_fallthru
          _
        // Predicated region
        $region17: #{_vit_block_call.1} parent=11 // pred_check
          %p345 = pneg %p91
        $region18: #{_vit_block_call.1} parent=11 // pred_check_branch
          %347 = sbr.rel (%p345) target = $region20
        $region19: #{_vit_block_call.1} parent=11 // pred_region
          _
        $region20: #{_vit_block_call.1} parent=11 // pred_fallthru
          _
        // Predicated region
        $region21: #{_vit_block_call.1} parent=11 // pred_check
          %p348 = pneg %p112
        $region22: #{_vit_block_call.1} parent=11 // pred_check_branch
          %350 = sbr.rel (%p348) target = $region24
        $region23: #{_vit_block_call.1} parent=11 // pred_region
          _
        $region24: #{_vit_block_call.1} parent=11 // pred_fallthru
          _
        // Predicated region
        $region25: #{_vit_block_call.1} parent=11 // pred_check
          %p351 = pneg %p133
        $region26: #{_vit_block_call.1} parent=11 // pred_check_branch
          %353 = sbr.rel (%p351) target = $region28
        $region27: #{_vit_block_call.1} parent=11 // pred_region
          _
        $region28: #{_vit_block_call.1} parent=11 // pred_fallthru
          _
        // Predicated region
        $region29: #{_vit_block_call.1} parent=11 // pred_check
          %p354 = pneg %p154
        $region30: #{_vit_block_call.1} parent=11 // pred_check_branch
          %356 = sbr.rel (%p354) target = $region32
        $region31: #{_vit_block_call.1} parent=11 // pred_region
          _
        $region32: #{_vit_block_call.1} parent=11 // pred_fallthru
          _
        // Predicated region
        $region33: #{_vit_block_call.1} parent=11 // pred_check
          %p357 = pneg %p175
        $region34: #{_vit_block_call.1} parent=11 // pred_check_branch
          %359 = sbr.rel (%p357) target = $region36
        $region35: #{_vit_block_call.1} parent=11 // pred_region
          _
        $region36: #{_vit_block_call.1} parent=11 // pred_fallthru
          _
        // Predicated region
        $region37: #{_vit_block_call.1} parent=11 // pred_check
          %p360 = pneg %p196
        $region38: #{_vit_block_call.1} parent=11 // pred_check_branch
          %362 = sbr.rel (%p360) target = $region40
        $region39: #{_vit_block_call.1} parent=11 // pred_region
          %s364 = ssub.s32 256, 256
          %365 = vsyncadd [#allocation3], %s364
          %s366 = sshll.u32 [#allocation2], 4
          %s367 = int_to_ptr.vmem [resolvable:$true] %s366
          %372 = dma.hbm_to_vmem [thread:$0]  %s7, 256, %s367, [#allocation3], 64, 64, 4
        $region40: #{_vit_block_call.1} parent=11 // pred_fallthru
          _
        // Predicated region
        $region41: #{_vit_block_call.1} parent=11 // pred_check
          %p373 = pneg %p217
        $region42: #{_vit_block_call.1} parent=11 // pred_check_branch
          %375 = sbr.rel (%p373) target = $region44
        $region43: #{_vit_block_call.1} parent=11 // pred_region
          _
        $region44: #{_vit_block_call.1} parent=11 // pred_fallthru
          _
        // Predicated region
        $region45: #{_vit_block_call.1} parent=11 // pred_check
          %p376 = pneg %p238
        $region46: #{_vit_block_call.1} parent=11 // pred_check_branch
          %378 = sbr.rel (%p376) target = $region48
        $region47: #{_vit_block_call.1} parent=11 // pred_region
          _
        $region48: #{_vit_block_call.1} parent=11 // pred_fallthru
          _
        // Predicated region
        $region49: #{_vit_block_call.1} parent=11 // pred_check
          %p379 = pneg %p259
        $region50: #{_vit_block_call.1} parent=11 // pred_check_branch
          %381 = sbr.rel (%p379) target = $region52
        $region51: #{_vit_block_call.1} parent=11 // pred_region
          _
        $region52: #{_vit_block_call.1} parent=11 // pred_fallthru
          _
        // Predicated region
        $region53: #{_vit_block_call.1} parent=11 // pred_check
          %p382 = pneg %p280
        $region54: #{_vit_block_call.1} parent=11 // pred_check_branch
          %384 = sbr.rel (%p382) target = $region56
        $region55: #{_vit_block_call.1} parent=11 // pred_region
          _
        $region56: #{_vit_block_call.1} parent=11 // pred_fallthru
          _
        // Predicated region
        $region57: #{_vit_block_call.1} parent=11 // pred_check
          %p385 = pneg %p301
        $region58: #{_vit_block_call.1} parent=11 // pred_check_branch
          %387 = sbr.rel (%p385) target = $region60
        $region59: #{_vit_block_call.1} parent=11 // pred_region
          _
        $region60: #{_vit_block_call.1} parent=11 // pred_fallthru
          _
      $region12: #{_vit_block_call.1} parent=5 // pred_fallthru
        _
      %p388 = scmp.lt.s32.totalorder %s23, 2
      // Predicated region
      $region61: #{_vit_block_call.1} parent=5 // pred_check
        %p389 = pneg %p388
      $region62: #{_vit_block_call.1} parent=5 // pred_check_branch
        %391 = sbr.rel (%p389) target = $region64
      $region63: #{_vit_block_call.1} parent=5 // pred_region
        // Predicated region
        $region65: #{_vit_block_call.1} parent=63 // pred_check
          %p392 = pneg %p43
        $region66: #{_vit_block_call.1} parent=63 // pred_check_branch
          %394 = sbr.rel (%p392) target = $region68
        $region67: #{_vit_block_call.1} parent=63 // pred_region
          %p395 = scmp.lt.s32.totalorder %s23, 1
          %s396 = scalar_select %p395, %s23, 1
          %s397 = smul.addr %s396, 8
          %s398 = scalar_lea.vmem %s0, %s397
        $region68: #{_vit_block_call.1} parent=63 // pred_fallthru
          _
      $region64: #{_vit_block_call.1} parent=5 // pred_fallthru
        _
      %p399 = scmp.le.s32.totalorder 1, %s23
      %p400 = scmp.lt.s32.totalorder %s23, 3
      %p401 = pnand %p399, %p400
      %p402 = pneg %p401
      // Predicated region
      $region69: #{_vit_block_call.1} parent=5 // pred_check
        _
      $region70: #{_vit_block_call.1} parent=5 // pred_check_branch
        %404 = sbr.rel (%p401) target = $region72
      $region71: #{_vit_block_call.1} parent=5 // pred_region
        %s405 = ssub.s32 %s23, 1
        // Predicated region
        $region73: #{_vit_block_call.1} parent=71 // pred_check
          %p406 = pneg %p196
        $region74: #{_vit_block_call.1} parent=71 // pred_check_branch
          %408 = sbr.rel (%p406) target = $region76
        $region75: #{_vit_block_call.1} parent=71 // pred_region
          %409 = dma.done [#allocation3], 256
        $region76: #{_vit_block_call.1} parent=71 // pred_fallthru
          _
        %p410 = scmp.lt.s32.totalorder %s28, 1
        %s411 = scalar_select %p410, %s28, 1
        %s412 = smul.addr %s411, 8
        %s413 = scalar_lea.vmem %s0, %s412
        %p414 = pneg %p49
        %p415 = pneg %p46
        %p416 = pneg %p70
        %p417 = pneg %p67
        %p418 = pneg %p91
        %p419 = pneg %p88
        %p420 = pneg %p112
        %p421 = pneg %p109
        %p422 = pneg %p133
        %p423 = pneg %p130
        %p424 = pneg %p154
        %p425 = pneg %p151
        %p426 = pneg %p175
        %p427 = pneg %p172
        %p428 = pneg %p196
        %p429 = pneg %p193
        %p430 = pneg %p217
        %p431 = pneg %p214
        %p432 = pneg %p238
        %p433 = pneg %p235
        %p434 = pneg %p259
        %p435 = pneg %p256
        %p436 = pneg %p280
        %p437 = pneg %p277
        %p438 = pneg %p301
        %p439 = pneg %p298
        %p440 = pneg %p327
        %p441 = pneg %p324
        %s442 = sand.u32 %s314, 1
        %s443 = scalar_lea.sflag [#allocation4], %s442
        %s444 = sand.u32 %s314, 1
        %s445 = smul.addr %s444, 8
        %s446 = scalar_lea.vmem [#allocation5], %s445
        %p447 = scmp.lt.s32.totalorder %s28, 1
        %s448 = scalar_select %p447, %s28, 1
        %s449 = smul.addr %s448, 8
        %s450 = scalar_lea.vmem %s0, %s449
        %v452 = vld [vmem:[%s450] sm:$0xff]
        %v453 = vpack.c.bf16 %v452, %v452
        %v454 = vld [vmem:[%s1] sm:$0xf]
        %v455 = vld [vmem:[%s1 + $0x4] sm:$0xf]
        %v456 = vld [vmem:[%s1 + $0x8] sm:$0xf]
        %v457 = vld [vmem:[%s1 + $0xc] sm:$0xf]
        %v458 = vld [vmem:[%s2] sm:$0x1]
        %v460 = vlaneseq
        %v461 = vshrl.u32 %v460, 7
        %v462 = vsub.s32 0, %v461
        %v463 = vrot.slane %v458, %v462
        %v469 = vunpack.c.l.b16 %v454
        %v470 = vunpack.c.l.b16 %v455
        %v471 = vunpack.c.l.b16 %v456
        %v472 = vunpack.c.l.b16 %v457
        %v473 = vpack.c.b16 %v470, %v469
        %v474 = vpack.c.b16 %v472, %v471
        %vm477 = vcmask 261120
        %v479 = vsel %vm477, %v453, 0
        %481 = vmatprep.subr.bf16.mxu0 0
        %482 = vmatpush1.bf16.msra.mxu0 %v473
        %483 = vmatprep.subr.bf16.mxu0 0
        %484 = vmatpush1.bf16.msra.mxu0 %v474
        %485 = vmatprep.subr.bf16.mxu0 0
        %486 = vmatpush1.bf16.msra.mxu0 0
        %487 = vmatprep.subr.bf16.mxu0 0
        %488 = vmatpush1.bf16.msra.mxu0 0
        %489 = vmatprep.subr.bf16.mxu0 0
        %490 = vmatpush1.bf16.msra.mxu0 0
        %491 = vmatprep.subr.bf16.mxu0 0
        %492 = vmatpush1.bf16.msra.mxu0 0
        %493 = vmatprep.subr.bf16.mxu0 0
        %494 = vmatpush1.bf16.msra.mxu0 0
        %495 = vmatprep.subr.bf16.mxu0 0
        %496 = vmatpush1.bf16.msra.mxu0 0
        %497 = vmatprep.subr.bf16.mxu0 0
        %498 = vmatpush1.bf16.msra.mxu0 0
        %499 = vmatprep.subr.bf16.mxu0 0
        %500 = vmatpush1.bf16.msra.mxu0 0
        %501 = vmatprep.subr.bf16.mxu0 0
        %502 = vmatpush1.bf16.msra.mxu0 0
        %503 = vmatprep.subr.bf16.mxu0 0
        %504 = vmatpush1.bf16.msra.mxu0 0
        %505 = vmatprep.subr.bf16.mxu0 0
        %506 = vmatpush1.bf16.msra.mxu0 0
        %507 = vmatprep.subr.bf16.mxu0 0
        %508 = vmatpush1.bf16.msra.mxu0 0
        %509 = vmatprep.subr.bf16.mxu0 0
        %510 = vmatpush1.bf16.msra.mxu0 0
        %511 = vmatprep.subr.bf16.mxu0 0
        %512 = vmatpush1.bf16.msra.mxu0 0
        %513 = vmatprep.mubr.bf16.mxu0 0
        %514 = vmatmul.mubr.bf16.gmra.mrb[0].mxu0 %v479
        %v515 = vpop.f32.mrb[0].mxu0
        %v516 = vadd.f32 %v463, %v515
        %v517 = vpop.f32.mrb[0].mxu0
        %v518 = vpop.f32.mrb[0].mxu0
        %v519 = vpop.f32.mrb[0].mxu0
        %520 = vdwg.mxu0
        %522 = vrot.lane.b32.xlu0 %v516, 120
        %v523 = vpop.permute.xlu0 %522
        %525 = vrot.lane.b32.xlu0 %v516, 112
        %v526 = vpop.permute.xlu0 %525
        %528 = vrot.lane.b32.xlu0 %v516, 104
        %v529 = vpop.permute.xlu0 %528
        %v531 = vcombine.low %v516, %v526
        %v532 = vcombine.high %v516, %v526
        %v534 = vunpack.c.l.s4 1983009808
        %v535 = vunpack.c.0.s8 %v534
        %v536 = vlaneseq
        %v537 = vshrl.u32 %v536, 7
        %v538 = vsub.s32 %v535, %v537
        %v539 = vrot.slane %v531, %v538
        %v541 = vunpack.c.l.s4 1983009808
        %v542 = vunpack.c.0.s8 %v541
        %v543 = vlaneseq
        %v544 = vshrl.u32 %v543, 7
        %v545 = vsub.s32 %v542, %v544
        %v546 = vrot.slane %v532, %v545
        %v547 = vcombine.low %v523, %v529
        %v548 = vcombine.high %v523, %v529
        %v550 = vunpack.c.l.s4 1983009808
        %v551 = vunpack.c.0.s8 %v550
        %v552 = vlaneseq
        %v553 = vshrl.u32 %v552, 7
        %v554 = vsub.s32 %v551, %v553
        %v555 = vrot.slane %v547, %v554
        %v557 = vunpack.c.l.s4 1983009808
        %v558 = vunpack.c.0.s8 %v557
        %v559 = vlaneseq
        %v560 = vshrl.u32 %v559, 7
        %v561 = vsub.s32 %v558, %v560
        %v562 = vrot.slane %v548, %v561
        %v563 = vcombine.low %v539, %v555
        %v564 = vcombine.high %v539, %v555
        %v566 = vunpack.c.l.s4 1934713408
        %v567 = vunpack.c.0.s8 %v566
        %v568 = vlaneseq
        %v569 = vshrl.u32 %v568, 7
        %v570 = vsub.s32 %v567, %v569
        %v571 = vrot.slane %v563, %v570
        %v573 = vunpack.c.l.s4 1934713408
        %v574 = vunpack.c.0.s8 %v573
        %v575 = vlaneseq
        %v576 = vshrl.u32 %v575, 7
        %v577 = vsub.s32 %v574, %v576
        %v578 = vrot.slane %v564, %v577
        %v579 = vcombine.low %v546, %v562
        %v580 = vcombine.high %v546, %v562
        %v582 = vunpack.c.l.s4 1934713408
        %v583 = vunpack.c.0.s8 %v582
        %v584 = vlaneseq
        %v585 = vshrl.u32 %v584, 7
        %v586 = vsub.s32 %v583, %v585
        %v587 = vrot.slane %v579, %v586
        %v589 = vunpack.c.l.s4 1934713408
        %v590 = vunpack.c.0.s8 %v589
        %v591 = vlaneseq
        %v592 = vshrl.u32 %v591, 7
        %v593 = vsub.s32 %v590, %v592
        %v594 = vrot.slane %v580, %v593
        %v595 = vcombine.high %v571, 0.0
        %v596 = vcombine.high %v578, 0.0
        %v597 = vcombine.high %v587, 0.0
        %v598 = vcombine.high %v594, 0.0
        %v599 = vcombine.low %v571, %v578
        %v601 = vunpack.c.l.s4 1983009808
        %v602 = vunpack.c.0.s8 %v601
        %v603 = vlaneseq
        %v604 = vshrl.u32 %v603, 7
        %v605 = vsub.s32 %v602, %v604
        %v606 = vrot.slane %v599, %v605
        %v607 = vcombine.low %v595, %v596
        %v609 = vunpack.c.l.s4 1983009808
        %v610 = vunpack.c.0.s8 %v609
        %v611 = vlaneseq
        %v612 = vshrl.u32 %v611, 7
        %v613 = vsub.s32 %v610, %v612
        %v614 = vrot.slane %v607, %v613
        %v615 = vcombine.low %v587, %v594
        %v617 = vunpack.c.l.s4 1983009808
        %v618 = vunpack.c.0.s8 %v617
        %v619 = vlaneseq
        %v620 = vshrl.u32 %v619, 7
        %v621 = vsub.s32 %v618, %v620
        %v622 = vrot.slane %v615, %v621
        %v623 = vcombine.low %v597, %v598
        %v625 = vunpack.c.l.s4 1983009808
        %v626 = vunpack.c.0.s8 %v625
        %v627 = vlaneseq
        %v628 = vshrl.u32 %v627, 7
        %v629 = vsub.s32 %v626, %v628
        %v630 = vrot.slane %v623, %v629
        %v631 = vcombine.low %v606, %v614
        %v632 = vcombine.high %v606, %v614
        %v634 = vunpack.c.l.s4 1934713408
        %v635 = vunpack.c.0.s8 %v634
        %v636 = vlaneseq
        %v637 = vshrl.u32 %v636, 7
        %v638 = vsub.s32 %v635, %v637
        %v639 = vrot.slane %v631, %v638
        %v641 = vunpack.c.l.s4 1934713408
        %v642 = vunpack.c.0.s8 %v641
        %v643 = vlaneseq
        %v644 = vshrl.u32 %v643, 7
        %v645 = vsub.s32 %v642, %v644
        %v646 = vrot.slane %v632, %v645
        %v647 = vcombine.low %v622, %v630
        %v648 = vcombine.high %v622, %v630
        %v650 = vunpack.c.l.s4 1934713408
        %v651 = vunpack.c.0.s8 %v650
        %v652 = vlaneseq
        %v653 = vshrl.u32 %v652, 7
        %v654 = vsub.s32 %v651, %v653
        %v655 = vrot.slane %v647, %v654
        %v657 = vunpack.c.l.s4 1934713408
        %v658 = vunpack.c.0.s8 %v657
        %v659 = vlaneseq
        %v660 = vshrl.u32 %v659, 7
        %v661 = vsub.s32 %v658, %v660
        %v662 = vrot.slane %v648, %v661
        %v663 = vcombine.low %v639, %v655
        %v664 = vcombine.high %v639, %v655
        %v665 = vcombine.low %v646, %v662
        %v666 = vcombine.high %v646, %v662
        %v667 = vpack.c.bf16 %v663, %v663
        %v668 = vpack.c.bf16 %v664, %v664
        %v669 = vpack.c.bf16 %v665, %v665
        %v670 = vpack.c.bf16 %v666, %v666
        %671 = vrot.lane.b32.xlu0 %v516, 96
        %v672 = vpop.permute.xlu0 %671
        %673 = vrot.lane.b32.xlu0 %v523, 96
        %v674 = vpop.permute.xlu0 %673
        %675 = vrot.lane.b32.xlu0 %v526, 96
        %v676 = vpop.permute.xlu0 %675
        %677 = vrot.lane.b32.xlu0 %v529, 96
        %v678 = vpop.permute.xlu0 %677
        %v683 = vcombine.low %v672, %v676
        %v684 = vcombine.high %v672, %v676
        %v686 = vunpack.c.l.s4 1983009808
        %v687 = vunpack.c.0.s8 %v686
        %v688 = vlaneseq
        %v689 = vshrl.u32 %v688, 7
        %v690 = vsub.s32 %v687, %v689
        %v691 = vrot.slane %v683, %v690
        %v693 = vunpack.c.l.s4 1983009808
        %v694 = vunpack.c.0.s8 %v693
        %v695 = vlaneseq
        %v696 = vshrl.u32 %v695, 7
        %v697 = vsub.s32 %v694, %v696
        %v698 = vrot.slane %v684, %v697
        %v699 = vcombine.low %v674, %v678
        %v700 = vcombine.high %v674, %v678
        %v702 = vunpack.c.l.s4 1983009808
        %v703 = vunpack.c.0.s8 %v702
        %v704 = vlaneseq
        %v705 = vshrl.u32 %v704, 7
        %v706 = vsub.s32 %v703, %v705
        %v707 = vrot.slane %v699, %v706
        %v709 = vunpack.c.l.s4 1983009808
        %v710 = vunpack.c.0.s8 %v709
        %v711 = vlaneseq
        %v712 = vshrl.u32 %v711, 7
        %v713 = vsub.s32 %v710, %v712
        %v714 = vrot.slane %v700, %v713
        %v715 = vcombine.low %v691, %v707
        %v716 = vcombine.high %v691, %v707
        %v718 = vunpack.c.l.s4 1934713408
        %v719 = vunpack.c.0.s8 %v718
        %v720 = vlaneseq
        %v721 = vshrl.u32 %v720, 7
        %v722 = vsub.s32 %v719, %v721
        %v723 = vrot.slane %v715, %v722
        %v725 = vunpack.c.l.s4 1934713408
        %v726 = vunpack.c.0.s8 %v725
        %v727 = vlaneseq
        %v728 = vshrl.u32 %v727, 7
        %v729 = vsub.s32 %v726, %v728
        %v730 = vrot.slane %v716, %v729
        %v731 = vcombine.low %v698, %v714
        %v732 = vcombine.high %v698, %v714
        %v734 = vunpack.c.l.s4 1934713408
        %v735 = vunpack.c.0.s8 %v734
        %v736 = vlaneseq
        %v737 = vshrl.u32 %v736, 7
        %v738 = vsub.s32 %v735, %v737
        %v739 = vrot.slane %v731, %v738
        %v741 = vunpack.c.l.s4 1934713408
        %v742 = vunpack.c.0.s8 %v741
        %v743 = vlaneseq
        %v744 = vshrl.u32 %v743, 7
        %v745 = vsub.s32 %v742, %v744
        %v746 = vrot.slane %v732, %v745
        %v747 = vcombine.high %v723, 0.0
        %v748 = vcombine.high %v730, 0.0
        %v749 = vcombine.high %v739, 0.0
        %v750 = vcombine.high %v746, 0.0
        %v751 = vcombine.low %v723, %v730
        %v753 = vunpack.c.l.s4 1983009808
        %v754 = vunpack.c.0.s8 %v753
        %v755 = vlaneseq
        %v756 = vshrl.u32 %v755, 7
        %v757 = vsub.s32 %v754, %v756
        %v758 = vrot.slane %v751, %v757
        %v759 = vcombine.low %v747, %v748
        %v761 = vunpack.c.l.s4 1983009808
        %v762 = vunpack.c.0.s8 %v761
        %v763 = vlaneseq
        %v764 = vshrl.u32 %v763, 7
        %v765 = vsub.s32 %v762, %v764
        %v766 = vrot.slane %v759, %v765
        %v767 = vcombine.low %v739, %v746
        %v769 = vunpack.c.l.s4 1983009808
        %v770 = vunpack.c.0.s8 %v769
        %v771 = vlaneseq
        %v772 = vshrl.u32 %v771, 7
        %v773 = vsub.s32 %v770, %v772
        %v774 = vrot.slane %v767, %v773
        %v775 = vcombine.low %v749, %v750
        %v777 = vunpack.c.l.s4 1983009808
        %v778 = vunpack.c.0.s8 %v777
        %v779 = vlaneseq
        %v780 = vshrl.u32 %v779, 7
        %v781 = vsub.s32 %v778, %v780
        %v782 = vrot.slane %v775, %v781
        %v783 = vcombine.low %v758, %v766
        %v784 = vcombine.high %v758, %v766
        %v786 = vunpack.c.l.s4 1934713408
        %v787 = vunpack.c.0.s8 %v786
        %v788 = vlaneseq
        %v789 = vshrl.u32 %v788, 7
        %v790 = vsub.s32 %v787, %v789
        %v791 = vrot.slane %v783, %v790
        %v793 = vunpack.c.l.s4 1934713408
        %v794 = vunpack.c.0.s8 %v793
        %v795 = vlaneseq
        %v796 = vshrl.u32 %v795, 7
        %v797 = vsub.s32 %v794, %v796
        %v798 = vrot.slane %v784, %v797
        %v799 = vcombine.low %v774, %v782
        %v800 = vcombine.high %v774, %v782
        %v802 = vunpack.c.l.s4 1934713408
        %v803 = vunpack.c.0.s8 %v802
        %v804 = vlaneseq
        %v805 = vshrl.u32 %v804, 7
        %v806 = vsub.s32 %v803, %v805
        %v807 = vrot.slane %v799, %v806
        %v809 = vunpack.c.l.s4 1934713408
        %v810 = vunpack.c.0.s8 %v809
        %v811 = vlaneseq
        %v812 = vshrl.u32 %v811, 7
        %v813 = vsub.s32 %v810, %v812
        %v814 = vrot.slane %v800, %v813
        %v815 = vcombine.low %v791, %v807
        %v816 = vcombine.high %v791, %v807
        %v817 = vcombine.low %v798, %v814
        %v818 = vcombine.high %v798, %v814
        %v819 = vpack.c.bf16 %v815, %v815
        %v820 = vpack.c.bf16 %v816, %v816
        %v821 = vpack.c.bf16 %v817, %v817
        %v822 = vpack.c.bf16 %v818, %v818
        %823 = vrot.lane.b32.xlu0 %v516, 64
        %v824 = vpop.permute.xlu0 %823
        %825 = vrot.lane.b32.xlu0 %v523, 64
        %v826 = vpop.permute.xlu0 %825
        %827 = vrot.lane.b32.xlu0 %v526, 64
        %v828 = vpop.permute.xlu0 %827
        %829 = vrot.lane.b32.xlu0 %v529, 64
        %v830 = vpop.permute.xlu0 %829
        %v835 = vcombine.low %v824, %v828
        %v836 = vcombine.high %v824, %v828
        %v838 = vunpack.c.l.s4 1983009808
        %v839 = vunpack.c.0.s8 %v838
        %v840 = vlaneseq
        %v841 = vshrl.u32 %v840, 7
        %v842 = vsub.s32 %v839, %v841
        %v843 = vrot.slane %v835, %v842
        %v845 = vunpack.c.l.s4 1983009808
        %v846 = vunpack.c.0.s8 %v845
        %v847 = vlaneseq
        %v848 = vshrl.u32 %v847, 7
        %v849 = vsub.s32 %v846, %v848
        %v850 = vrot.slane %v836, %v849
        %v851 = vcombine.low %v826, %v830
        %v852 = vcombine.high %v826, %v830
        %v854 = vunpack.c.l.s4 1983009808
        %v855 = vunpack.c.0.s8 %v854
        %v856 = vlaneseq
        %v857 = vshrl.u32 %v856, 7
        %v858 = vsub.s32 %v855, %v857
        %v859 = vrot.slane %v851, %v858
        %v861 = vunpack.c.l.s4 1983009808
        %v862 = vunpack.c.0.s8 %v861
        %v863 = vlaneseq
        %v864 = vshrl.u32 %v863, 7
        %v865 = vsub.s32 %v862, %v864
        %v866 = vrot.slane %v852, %v865
        %v867 = vcombine.low %v843, %v859
        %v868 = vcombine.high %v843, %v859
        %v870 = vunpack.c.l.s4 1934713408
        %v871 = vunpack.c.0.s8 %v870
        %v872 = vlaneseq
        %v873 = vshrl.u32 %v872, 7
        %v874 = vsub.s32 %v871, %v873
        %v875 = vrot.slane %v867, %v874
        %v877 = vunpack.c.l.s4 1934713408
        %v878 = vunpack.c.0.s8 %v877
        %v879 = vlaneseq
        %v880 = vshrl.u32 %v879, 7
        %v881 = vsub.s32 %v878, %v880
        %v882 = vrot.slane %v868, %v881
        %v883 = vcombine.low %v850, %v866
        %v884 = vcombine.high %v850, %v866
        %v886 = vunpack.c.l.s4 1934713408
        %v887 = vunpack.c.0.s8 %v886
        %v888 = vlaneseq
        %v889 = vshrl.u32 %v888, 7
        %v890 = vsub.s32 %v887, %v889
        %v891 = vrot.slane %v883, %v890
        %v893 = vunpack.c.l.s4 1934713408
        %v894 = vunpack.c.0.s8 %v893
        %v895 = vlaneseq
        %v896 = vshrl.u32 %v895, 7
        %v897 = vsub.s32 %v894, %v896
        %v898 = vrot.slane %v884, %v897
        %v899 = vcombine.high %v875, 0.0
        %v900 = vcombine.high %v882, 0.0
        %v901 = vcombine.high %v891, 0.0
        %v902 = vcombine.high %v898, 0.0
        %v903 = vcombine.low %v875, %v882
        %v905 = vunpack.c.l.s4 1983009808
        %v906 = vunpack.c.0.s8 %v905
        %v907 = vlaneseq
        %v908 = vshrl.u32 %v907, 7
        %v909 = vsub.s32 %v906, %v908
        %v910 = vrot.slane %v903, %v909
        %v911 = vcombine.low %v899, %v900
        %v913 = vunpack.c.l.s4 1983009808
        %v914 = vunpack.c.0.s8 %v913
        %v915 = vlaneseq
        %v916 = vshrl.u32 %v915, 7
        %v917 = vsub.s32 %v914, %v916
        %v918 = vrot.slane %v911, %v917
        %v919 = vcombine.low %v891, %v898
        %v921 = vunpack.c.l.s4 1983009808
        %v922 = vunpack.c.0.s8 %v921
        %v923 = vlaneseq
        %v924 = vshrl.u32 %v923, 7
        %v925 = vsub.s32 %v922, %v924
        %v926 = vrot.slane %v919, %v925
        %v927 = vcombine.low %v901, %v902
        %v929 = vunpack.c.l.s4 1983009808
        %v930 = vunpack.c.0.s8 %v929
        %v931 = vlaneseq
        %v932 = vshrl.u32 %v931, 7
        %v933 = vsub.s32 %v930, %v932
        %v934 = vrot.slane %v927, %v933
        %v935 = vcombine.low %v910, %v918
        %v936 = vcombine.high %v910, %v918
        %v938 = vunpack.c.l.s4 1934713408
        %v939 = vunpack.c.0.s8 %v938
        %v940 = vlaneseq
        %v941 = vshrl.u32 %v940, 7
        %v942 = vsub.s32 %v939, %v941
        %v943 = vrot.slane %v935, %v942
        %v945 = vunpack.c.l.s4 1934713408
        %v946 = vunpack.c.0.s8 %v945
        %v947 = vlaneseq
        %v948 = vshrl.u32 %v947, 7
        %v949 = vsub.s32 %v946, %v948
        %v950 = vrot.slane %v936, %v949
        %v951 = vcombine.low %v926, %v934
        %v952 = vcombine.high %v926, %v934
        %v954 = vunpack.c.l.s4 1934713408
        %v955 = vunpack.c.0.s8 %v954
        %v956 = vlaneseq
        %v957 = vshrl.u32 %v956, 7
        %v958 = vsub.s32 %v955, %v957
        %v959 = vrot.slane %v951, %v958
        %v961 = vunpack.c.l.s4 1934713408
        %v962 = vunpack.c.0.s8 %v961
        %v963 = vlaneseq
        %v964 = vshrl.u32 %v963, 7
        %v965 = vsub.s32 %v962, %v964
        %v966 = vrot.slane %v952, %v965
        %v967 = vcombine.low %v943, %v959
        %v968 = vcombine.high %v943, %v959
        %v969 = vcombine.low %v950, %v966
        %v970 = vcombine.high %v950, %v966
        %v971 = vpack.c.bf16 %v967, %v967
        %v972 = vpack.c.bf16 %v968, %v968
        %v973 = vpack.c.bf16 %v969, %v969
        %v974 = vpack.c.bf16 %v970, %v970
        %vm975 = vcmask 64512
        %v977 = vsel %vm975, %v667, 0
        %v980 = vsel %vm975, %v819, 0
        %982 = vmatprep.subr.bf16.mxu0 0
        %983 = vmatpush1.bf16.xpose.msra.mxu0 %v980
        %984 = vmatprep.subr.bf16.mxu0 0
        %985 = vmatpush1.bf16.xpose.msra.mxu0 0
        %986 = vmatprep.subr.bf16.mxu0 0
        %987 = vmatpush1.bf16.xpose.msra.mxu0 0
        %988 = vmatprep.subr.bf16.mxu0 0
        %989 = vmatpush1.bf16.xpose.msra.mxu0 0
        %990 = vmatprep.subr.bf16.mxu0 0
        %991 = vmatpush1.bf16.xpose.msra.mxu0 0
        %992 = vmatprep.subr.bf16.mxu0 0
        %993 = vmatpush1.bf16.xpose.msra.mxu0 0
        %994 = vmatprep.subr.bf16.mxu0 0
        %995 = vmatpush1.bf16.xpose.msra.mxu0 0
        %996 = vmatprep.subr.bf16.mxu0 0
        %997 = vmatpush1.bf16.xpose.msra.mxu0 0
        %998 = vmatprep.subr.bf16.mxu0 0
        %999 = vmatpush1.bf16.xpose.msra.mxu0 0
        %1000 = vmatprep.subr.bf16.mxu0 0
        %1001 = vmatpush1.bf16.xpose.msra.mxu0 0
        %1002 = vmatprep.subr.bf16.mxu0 0
        %1003 = vmatpush1.bf16.xpose.msra.mxu0 0
        %1004 = vmatprep.subr.bf16.mxu0 0
        %1005 = vmatpush1.bf16.xpose.msra.mxu0 0
        %1006 = vmatprep.subr.bf16.mxu0 0
        %1007 = vmatpush1.bf16.xpose.msra.mxu0 0
        %1008 = vmatprep.subr.bf16.mxu0 0
        %1009 = vmatpush1.bf16.xpose.msra.mxu0 0
        %1010 = vmatprep.subr.bf16.mxu0 0
        %1011 = vmatpush1.bf16.xpose.msra.mxu0 0
        %1012 = vmatprep.subr.bf16.mxu0 0
        %1013 = vmatpush1.bf16.xpose.msra.mxu0 0
        %1014 = vmatprep.mubr.bf16.mxu0 0
        %1015 = vmatmul.mubr.bf16.gmra.mrb[0].mxu0 %v977
        %v1016 = vpop.f32.mrb[0].mxu0
        %v1017 = vadd.f32 0.0, %v1016
        %v1018 = vpop.f32.mrb[0].mxu0
        %v1019 = vpop.f32.mrb[0].mxu0
        %v1020 = vpop.f32.mrb[0].mxu0
        %1021 = vdwg.mxu0
        %v1023 = vsel %vm975, %v668, 0
        %v1026 = vsel %vm975, %v820, 0
        %1028 = vmatprep.subr.bf16.mxu0 0
        %1029 = vmatpush1.bf16.xpose.msra.mxu0 %v1026
        %1030 = vmatprep.subr.bf16.mxu0 0
        %1031 = vmatpush1.bf16.xpose.msra.mxu0 0
        %1032 = vmatprep.subr.bf16.mxu0 0
        %1033 = vmatpush1.bf16.xpose.msra.mxu0 0
        %1034 = vmatprep.subr.bf16.mxu0 0
        %1035 = vmatpush1.bf16.xpose.msra.mxu0 0
        %1036 = vmatprep.subr.bf16.mxu0 0
        %1037 = vmatpush1.bf16.xpose.msra.mxu0 0
        %1038 = vmatprep.subr.bf16.mxu0 0
        %1039 = vmatpush1.bf16.xpose.msra.mxu0 0
        %1040 = vmatprep.subr.bf16.mxu0 0
        %1041 = vmatpush1.bf16.xpose.msra.mxu0 0
        %1042 = vmatprep.subr.bf16.mxu0 0
        %1043 = vmatpush1.bf16.xpose.msra.mxu0 0
        %1044 = vmatprep.subr.bf16.mxu0 0
        %1045 = vmatpush1.bf16.xpose.msra.mxu0 0
        %1046 = vmatprep.subr.bf16.mxu0 0
        %1047 = vmatpush1.bf16.xpose.msra.mxu0 0
        %1048 = vmatprep.subr.bf16.mxu0 0
        %1049 = vmatpush1.bf16.xpose.msra.mxu0 0
        %1050 = vmatprep.subr.bf16.mxu0 0
        %1051 = vmatpush1.bf16.xpose.msra.mxu0 0
        %1052 = vmatprep.subr.bf16.mxu0 0
        %1053 = vmatpush1.bf16.xpose.msra.mxu0 0
        %1054 = vmatprep.subr.bf16.mxu0 0
        %1055 = vmatpush1.bf16.xpose.msra.mxu0 0
        %1056 = vmatprep.subr.bf16.mxu0 0
        %1057 = vmatpush1.bf16.xpose.msra.mxu0 0
        %1058 = vmatprep.subr.bf16.mxu0 0
        %1059 = vmatpush1.bf16.xpose.msra.mxu0 0
        %1060 = vmatprep.mubr.bf16.mxu0 0
        %1061 = vmatmul.mubr.bf16.gmra.mrb[0].mxu0 %v1023
        %v1062 = vpop.f32.mrb[0].mxu0
        %v1063 = vadd.f32 0.0, %v1062
        %v1064 = vpop.f32.mrb[0].mxu0
        %v1065 = vpop.f32.mrb[0].mxu0
        %v1066 = vpop.f32.mrb[0].mxu0
        %1067 = vdwg.mxu0
        %v1069 = vsel %vm975, %v669, 0
        %v1072 = vsel %vm975, %v821, 0
        %1074 = vmatprep.subr.bf16.mxu0 0
        %1075 = vmatpush1.bf16.xpose.msra.mxu0 %v1072
        %1076 = vmatprep.subr.bf16.mxu0 0
        %1077 = vmatpush1.bf16.xpose.msra.mxu0 0
        %1078 = vmatprep.subr.bf16.mxu0 0
        %1079 = vmatpush1.bf16.xpose.msra.mxu0 0
        %1080 = vmatprep.subr.bf16.mxu0 0
        %1081 = vmatpush1.bf16.xpose.msra.mxu0 0
        %1082 = vmatprep.subr.bf16.mxu0 0
        %1083 = vmatpush1.bf16.xpose.msra.mxu0 0
        %1084 = vmatprep.subr.bf16.mxu0 0
        %1085 = vmatpush1.bf16.xpose.msra.mxu0 0
        %1086 = vmatprep.subr.bf16.mxu0 0
        %1087 = vmatpush1.bf16.xpose.msra.mxu0 0
        %1088 = vmatprep.subr.bf16.mxu0 0
        %1089 = vmatpush1.bf16.xpose.msra.mxu0 0
        %1090 = vmatprep.subr.bf16.mxu0 0
        %1091 = vmatpush1.bf16.xpose.msra.mxu0 0
        %1092 = vmatprep.subr.bf16.mxu0 0
        %1093 = vmatpush1.bf16.xpose.msra.mxu0 0
        %1094 = vmatprep.subr.bf16.mxu0 0
        %1095 = vmatpush1.bf16.xpose.msra.mxu0 0
        %1096 = vmatprep.subr.bf16.mxu0 0
        %1097 = vmatpush1.bf16.xpose.msra.mxu0 0
        %1098 = vmatprep.subr.bf16.mxu0 0
        %1099 = vmatpush1.bf16.xpose.msra.mxu0 0
        %1100 = vmatprep.subr.bf16.mxu0 0
        %1101 = vmatpush1.bf16.xpose.msra.mxu0 0
        %1102 = vmatprep.subr.bf16.mxu0 0
        %1103 = vmatpush1.bf16.xpose.msra.mxu0 0
        %1104 = vmatprep.subr.bf16.mxu0 0
        %1105 = vmatpush1.bf16.xpose.msra.mxu0 0
        %1106 = vmatprep.mubr.bf16.mxu0 0
        %1107 = vmatmul.mubr.bf16.gmra.mrb[0].mxu0 %v1069
        %v1108 = vpop.f32.mrb[0].mxu0
        %v1109 = vadd.f32 0.0, %v1108
        %v1110 = vpop.f32.mrb[0].mxu0
        %v1111 = vpop.f32.mrb[0].mxu0
        %v1112 = vpop.f32.mrb[0].mxu0
        %1113 = vdwg.mxu0
        %v1115 = vsel %vm975, %v670, 0
        %v1118 = vsel %vm975, %v822, 0
        %1120 = vmatprep.subr.bf16.mxu0 0
        %1121 = vmatpush1.bf16.xpose.msra.mxu0 %v1118
        %1122 = vmatprep.subr.bf16.mxu0 0
        %1123 = vmatpush1.bf16.xpose.msra.mxu0 0
        %1124 = vmatprep.subr.bf16.mxu0 0
        %1125 = vmatpush1.bf16.xpose.msra.mxu0 0
        %1126 = vmatprep.subr.bf16.mxu0 0
        %1127 = vmatpush1.bf16.xpose.msra.mxu0 0
        %1128 = vmatprep.subr.bf16.mxu0 0
        %1129 = vmatpush1.bf16.xpose.msra.mxu0 0
        %1130 = vmatprep.subr.bf16.mxu0 0
        %1131 = vmatpush1.bf16.xpose.msra.mxu0 0
        %1132 = vmatprep.subr.bf16.mxu0 0
        %1133 = vmatpush1.bf16.xpose.msra.mxu0 0
        %1134 = vmatprep.subr.bf16.mxu0 0
        %1135 = vmatpush1.bf16.xpose.msra.mxu0 0
        %1136 = vmatprep.subr.bf16.mxu0 0
        %1137 = vmatpush1.bf16.xpose.msra.mxu0 0
        %1138 = vmatprep.subr.bf16.mxu0 0
        %1139 = vmatpush1.bf16.xpose.msra.mxu0 0
        %1140 = vmatprep.subr.bf16.mxu0 0
        %1141 = vmatpush1.bf16.xpose.msra.mxu0 0
        %1142 = vmatprep.subr.bf16.mxu0 0
        %1143 = vmatpush1.bf16.xpose.msra.mxu0 0
        %1144 = vmatprep.subr.bf16.mxu0 0
        %1145 = vmatpush1.bf16.xpose.msra.mxu0 0
        %1146 = vmatprep.subr.bf16.mxu0 0
        %1147 = vmatpush1.bf16.xpose.msra.mxu0 0
        %1148 = vmatprep.subr.bf16.mxu0 0
        %1149 = vmatpush1.bf16.xpose.msra.mxu0 0
        %1150 = vmatprep.subr.bf16.mxu0 0
        %1151 = vmatpush1.bf16.xpose.msra.mxu0 0
        %1152 = vmatprep.mubr.bf16.mxu0 0
        %1153 = vmatmul.mubr.bf16.gmra.mrb[0].mxu0 %v1115
        %v1154 = vpop.f32.mrb[0].mxu0
        %v1155 = vadd.f32 0.0, %v1154
        %v1156 = vpop.f32.mrb[0].mxu0
        %v1157 = vpop.f32.mrb[0].mxu0
        %v1158 = vpop.f32.mrb[0].mxu0
        %1159 = vdwg.mxu0
        %v1160 = vsel %vm975, %v1017, -inf
        %1161 = vmax.xlane.f32.xlu0 %v1160
        %v1162 = vpop.xlane.xlu0 %1161
        %v1163 = vsel %vm975, %v1063, -inf
        %1164 = vmax.xlane.f32.xlu0 %v1163
        %v1165 = vpop.xlane.xlu0 %1164
        %v1166 = vsel %vm975, %v1109, -inf
        %1167 = vmax.xlane.f32.xlu0 %v1166
        %v1168 = vpop.xlane.xlu0 %1167
        %v1169 = vsel %vm975, %v1155, -inf
        %1170 = vmax.xlane.f32.xlu0 %v1169
        %v1171 = vpop.xlane.xlu0 %1170
        %v1172 = vsub.f32 %v1017, %v1162
        %v1173 = vsub.f32 %v1063, %v1165
        %v1174 = vsub.f32 %v1109, %v1168
        %v1175 = vsub.f32 %v1155, %v1171
        %v1176 = vmul.f32 %v1172, 1.442695
        %v1177 = vpow.pop %v1176
        %v1178 = vmul.f32 %v1173, 1.442695
        %v1179 = vpow.pop %v1178
        %v1180 = vmul.f32 %v1174, 1.442695
        %v1181 = vpow.pop %v1180
        %v1182 = vmul.f32 %v1175, 1.442695
        %v1183 = vpow.pop %v1182
        %v1184 = vsel %vm975, %v1177, 0.0
        %1185 = vadd.xlane.f32.xlu0 %v1184
        %v1186 = vpop.xlane.xlu0 %1185
        %v1187 = vsel %vm975, %v1179, 0.0
        %1188 = vadd.xlane.f32.xlu0 %v1187
        %v1189 = vpop.xlane.xlu0 %1188
        %v1190 = vsel %vm975, %v1181, 0.0
        %1191 = vadd.xlane.f32.xlu0 %v1190
        %v1192 = vpop.xlane.xlu0 %1191
        %v1193 = vsel %vm975, %v1183, 0.0
        %1194 = vadd.xlane.f32.xlu0 %v1193
        %v1195 = vpop.xlane.xlu0 %1194
        %v1196 = vrcp.pop %v1186
        %v1197 = vrcp.pop %v1189
        %v1198 = vrcp.pop %v1192
        %v1199 = vrcp.pop %v1195
        %v1200 = vmul.f32 %v1177, %v1196
        %v1201 = vmul.f32 %v1179, %v1197
        %v1202 = vmul.f32 %v1181, %v1198
        %v1203 = vmul.f32 %v1183, %v1199
        %v1204 = vpack.c.bf16 %v1200, %v1200
        %v1205 = vpack.c.bf16 %v1201, %v1201
        %v1206 = vpack.c.bf16 %v1202, %v1202
        %v1207 = vpack.c.bf16 %v1203, %v1203
        %v1209 = vsel %vm975, %v1204, 0
        %vm1211 = vcmask 1043456
        %v1213 = vsel %vm1211, %v971, 0
        %1215 = vmatprep.subr.bf16.mxu0 0
        %1216 = vmatpush1.bf16.msra.mxu0 %v1213
        %1217 = vmatprep.subr.bf16.mxu0 0
        %1218 = vmatpush1.bf16.msra.mxu0 0
        %1219 = vmatprep.subr.bf16.mxu0 0
        %1220 = vmatpush1.bf16.msra.mxu0 0
        %1221 = vmatprep.subr.bf16.mxu0 0
        %1222 = vmatpush1.bf16.msra.mxu0 0
        %1223 = vmatprep.subr.bf16.mxu0 0
        %1224 = vmatpush1.bf16.msra.mxu0 0
        %1225 = vmatprep.subr.bf16.mxu0 0
        %1226 = vmatpush1.bf16.msra.mxu0 0
        %1227 = vmatprep.subr.bf16.mxu0 0
        %1228 = vmatpush1.bf16.msra.mxu0 0
        %1229 = vmatprep.subr.bf16.mxu0 0
        %1230 = vmatpush1.bf16.msra.mxu0 0
        %1231 = vmatprep.subr.bf16.mxu0 0
        %1232 = vmatpush1.bf16.msra.mxu0 0
        %1233 = vmatprep.subr.bf16.mxu0 0
        %1234 = vmatpush1.bf16.msra.mxu0 0
        %1235 = vmatprep.subr.bf16.mxu0 0
        %1236 = vmatpush1.bf16.msra.mxu0 0
        %1237 = vmatprep.subr.bf16.mxu0 0
        %1238 = vmatpush1.bf16.msra.mxu0 0
        %1239 = vmatprep.subr.bf16.mxu0 0
        %1240 = vmatpush1.bf16.msra.mxu0 0
        %1241 = vmatprep.subr.bf16.mxu0 0
        %1242 = vmatpush1.bf16.msra.mxu0 0
        %1243 = vmatprep.subr.bf16.mxu0 0
        %1244 = vmatpush1.bf16.msra.mxu0 0
        %1245 = vmatprep.subr.bf16.mxu0 0
        %1246 = vmatpush1.bf16.msra.mxu0 0
        %1247 = vmatprep.mubr.bf16.mxu0 0
        %1248 = vmatmul.mubr.bf16.gmra.mrb[0].mxu0 %v1209
        %v1249 = vpop.f32.mrb[0].mxu0
        %v1250 = vadd.f32 0.0, %v1249
        %v1251 = vpop.f32.mrb[0].mxu0
        %v1252 = vpop.f32.mrb[0].mxu0
        %v1253 = vpop.f32.mrb[0].mxu0
        %1254 = vdwg.mxu0
        %v1256 = vsel %vm975, %v1205, 0
        %v1259 = vsel %vm1211, %v972, 0
        %1261 = vmatprep.subr.bf16.mxu0 0
        %1262 = vmatpush1.bf16.msra.mxu0 %v1259
        %1263 = vmatprep.subr.bf16.mxu0 0
        %1264 = vmatpush1.bf16.msra.mxu0 0
        %1265 = vmatprep.subr.bf16.mxu0 0
        %1266 = vmatpush1.bf16.msra.mxu0 0
        %1267 = vmatprep.subr.bf16.mxu0 0
        %1268 = vmatpush1.bf16.msra.mxu0 0
        %1269 = vmatprep.subr.bf16.mxu0 0
        %1270 = vmatpush1.bf16.msra.mxu0 0
        %1271 = vmatprep.subr.bf16.mxu0 0
        %1272 = vmatpush1.bf16.msra.mxu0 0
        %1273 = vmatprep.subr.bf16.mxu0 0
        %1274 = vmatpush1.bf16.msra.mxu0 0
        %1275 = vmatprep.subr.bf16.mxu0 0
        %1276 = vmatpush1.bf16.msra.mxu0 0
        %1277 = vmatprep.subr.bf16.mxu0 0
        %1278 = vmatpush1.bf16.msra.mxu0 0
        %1279 = vmatprep.subr.bf16.mxu0 0
        %1280 = vmatpush1.bf16.msra.mxu0 0
        %1281 = vmatprep.subr.bf16.mxu0 0
        %1282 = vmatpush1.bf16.msra.mxu0 0
        %1283 = vmatprep.subr.bf16.mxu0 0
        %1284 = vmatpush1.bf16.msra.mxu0 0
        %1285 = vmatprep.subr.bf16.mxu0 0
        %1286 = vmatpush1.bf16.msra.mxu0 0
        %1287 = vmatprep.subr.bf16.mxu0 0
        %1288 = vmatpush1.bf16.msra.mxu0 0
        %1289 = vmatprep.subr.bf16.mxu0 0
        %1290 = vmatpush1.bf16.msra.mxu0 0
        %1291 = vmatprep.subr.bf16.mxu0 0
        %1292 = vmatpush1.bf16.msra.mxu0 0
        %1293 = vmatprep.mubr.bf16.mxu0 0
        %1294 = vmatmul.mubr.bf16.gmra.mrb[0].mxu0 %v1256
        %v1295 = vpop.f32.mrb[0].mxu0
        %v1296 = vadd.f32 0.0, %v1295
        %v1297 = vpop.f32.mrb[0].mxu0
        %v1298 = vpop.f32.mrb[0].mxu0
        %v1299 = vpop.f32.mrb[0].mxu0
        %1300 = vdwg.mxu0
        %v1302 = vsel %vm975, %v1206, 0
        %v1305 = vsel %vm1211, %v973, 0
        %1307 = vmatprep.subr.bf16.mxu0 0
        %1308 = vmatpush1.bf16.msra.mxu0 %v1305
        %1309 = vmatprep.subr.bf16.mxu0 0
        %1310 = vmatpush1.bf16.msra.mxu0 0
        %1311 = vmatprep.subr.bf16.mxu0 0
        %1312 = vmatpush1.bf16.msra.mxu0 0
        %1313 = vmatprep.subr.bf16.mxu0 0
        %1314 = vmatpush1.bf16.msra.mxu0 0
        %1315 = vmatprep.subr.bf16.mxu0 0
        %1316 = vmatpush1.bf16.msra.mxu0 0
        %1317 = vmatprep.subr.bf16.mxu0 0
        %1318 = vmatpush1.bf16.msra.mxu0 0
        %1319 = vmatprep.subr.bf16.mxu0 0
        %1320 = vmatpush1.bf16.msra.mxu0 0
        %1321 = vmatprep.subr.bf16.mxu0 0
        %1322 = vmatpush1.bf16.msra.mxu0 0
        %1323 = vmatprep.subr.bf16.mxu0 0
        %1324 = vmatpush1.bf16.msra.mxu0 0
        %1325 = vmatprep.subr.bf16.mxu0 0
        %1326 = vmatpush1.bf16.msra.mxu0 0
        %1327 = vmatprep.subr.bf16.mxu0 0
        %1328 = vmatpush1.bf16.msra.mxu0 0
        %1329 = vmatprep.subr.bf16.mxu0 0
        %1330 = vmatpush1.bf16.msra.mxu0 0
        %1331 = vmatprep.subr.bf16.mxu0 0
        %1332 = vmatpush1.bf16.msra.mxu0 0
        %1333 = vmatprep.subr.bf16.mxu0 0
        %1334 = vmatpush1.bf16.msra.mxu0 0
        %1335 = vmatprep.subr.bf16.mxu0 0
        %1336 = vmatpush1.bf16.msra.mxu0 0
        %1337 = vmatprep.subr.bf16.mxu0 0
        %1338 = vmatpush1.bf16.msra.mxu0 0
        %1339 = vmatprep.mubr.bf16.mxu0 0
        %1340 = vmatmul.mubr.bf16.gmra.mrb[0].mxu0 %v1302
        %v1341 = vpop.f32.mrb[0].mxu0
        %v1342 = vadd.f32 0.0, %v1341
        %v1343 = vpop.f32.mrb[0].mxu0
        %v1344 = vpop.f32.mrb[0].mxu0
        %v1345 = vpop.f32.mrb[0].mxu0
        %1346 = vdwg.mxu0
        %v1348 = vsel %vm975, %v1207, 0
        %v1351 = vsel %vm1211, %v974, 0
        %1353 = vmatprep.subr.bf16.mxu0 0
        %1354 = vmatpush1.bf16.msra.mxu0 %v1351
        %1355 = vmatprep.subr.bf16.mxu0 0
        %1356 = vmatpush1.bf16.msra.mxu0 0
        %1357 = vmatprep.subr.bf16.mxu0 0
        %1358 = vmatpush1.bf16.msra.mxu0 0
        %1359 = vmatprep.subr.bf16.mxu0 0
        %1360 = vmatpush1.bf16.msra.mxu0 0
        %1361 = vmatprep.subr.bf16.mxu0 0
        %1362 = vmatpush1.bf16.msra.mxu0 0
        %1363 = vmatprep.subr.bf16.mxu0 0
        %1364 = vmatpush1.bf16.msra.mxu0 0
        %1365 = vmatprep.subr.bf16.mxu0 0
        %1366 = vmatpush1.bf16.msra.mxu0 0
        %1367 = vmatprep.subr.bf16.mxu0 0
        %1368 = vmatpush1.bf16.msra.mxu0 0
        %1369 = vmatprep.subr.bf16.mxu0 0
        %1370 = vmatpush1.bf16.msra.mxu0 0
        %1371 = vmatprep.subr.bf16.mxu0 0
        %1372 = vmatpush1.bf16.msra.mxu0 0
        %1373 = vmatprep.subr.bf16.mxu0 0
        %1374 = vmatpush1.bf16.msra.mxu0 0
        %1375 = vmatprep.subr.bf16.mxu0 0
        %1376 = vmatpush1.bf16.msra.mxu0 0
        %1377 = vmatprep.subr.bf16.mxu0 0
        %1378 = vmatpush1.bf16.msra.mxu0 0
        %1379 = vmatprep.subr.bf16.mxu0 0
        %1380 = vmatpush1.bf16.msra.mxu0 0
        %1381 = vmatprep.subr.bf16.mxu0 0
        %1382 = vmatpush1.bf16.msra.mxu0 0
        %1383 = vmatprep.subr.bf16.mxu0 0
        %1384 = vmatpush1.bf16.msra.mxu0 0
        %1385 = vmatprep.mubr.bf16.mxu0 0
        %1386 = vmatmul.mubr.bf16.gmra.mrb[0].mxu0 %v1348
        %v1387 = vpop.f32.mrb[0].mxu0
        %v1388 = vadd.f32 0.0, %v1387
        %v1389 = vpop.f32.mrb[0].mxu0
        %v1390 = vpop.f32.mrb[0].mxu0
        %v1391 = vpop.f32.mrb[0].mxu0
        %1392 = vdwg.mxu0
        %v1393 = vcombine.low %v1250, %v1342
        %v1394 = vcombine.high %v1250, %v1342
        %v1396 = vunpack.c.l.s4 1983009808
        %v1397 = vunpack.c.0.s8 %v1396
        %v1398 = vlaneseq
        %v1399 = vshrl.u32 %v1398, 7
        %v1400 = vsub.s32 %v1397, %v1399
        %v1401 = vrot.slane %v1393, %v1400
        %v1403 = vunpack.c.l.s4 1983009808
        %v1404 = vunpack.c.0.s8 %v1403
        %v1405 = vlaneseq
        %v1406 = vshrl.u32 %v1405, 7
        %v1407 = vsub.s32 %v1404, %v1406
        %v1408 = vrot.slane %v1394, %v1407
        %v1409 = vcombine.low %v1296, %v1388
        %v1410 = vcombine.high %v1296, %v1388
        %v1412 = vunpack.c.l.s4 1983009808
        %v1413 = vunpack.c.0.s8 %v1412
        %v1414 = vlaneseq
        %v1415 = vshrl.u32 %v1414, 7
        %v1416 = vsub.s32 %v1413, %v1415
        %v1417 = vrot.slane %v1409, %v1416
        %v1419 = vunpack.c.l.s4 1983009808
        %v1420 = vunpack.c.0.s8 %v1419
        %v1421 = vlaneseq
        %v1422 = vshrl.u32 %v1421, 7
        %v1423 = vsub.s32 %v1420, %v1422
        %v1424 = vrot.slane %v1410, %v1423
        %v1425 = vcombine.low %v1401, %v1417
        %v1426 = vcombine.high %v1401, %v1417
        %v1428 = vunpack.c.l.s4 1934713408
        %v1429 = vunpack.c.0.s8 %v1428
        %v1430 = vlaneseq
        %v1431 = vshrl.u32 %v1430, 7
        %v1432 = vsub.s32 %v1429, %v1431
        %v1433 = vrot.slane %v1425, %v1432
        %v1435 = vunpack.c.l.s4 1934713408
        %v1436 = vunpack.c.0.s8 %v1435
        %v1437 = vlaneseq
        %v1438 = vshrl.u32 %v1437, 7
        %v1439 = vsub.s32 %v1436, %v1438
        %v1440 = vrot.slane %v1426, %v1439
        %v1441 = vcombine.low %v1408, %v1424
        %v1442 = vcombine.high %v1408, %v1424
        %v1444 = vunpack.c.l.s4 1934713408
        %v1445 = vunpack.c.0.s8 %v1444
        %v1446 = vlaneseq
        %v1447 = vshrl.u32 %v1446, 7
        %v1448 = vsub.s32 %v1445, %v1447
        %v1449 = vrot.slane %v1441, %v1448
        %v1451 = vunpack.c.l.s4 1934713408
        %v1452 = vunpack.c.0.s8 %v1451
        %v1453 = vlaneseq
        %v1454 = vshrl.u32 %v1453, 7
        %v1455 = vsub.s32 %v1452, %v1454
        %v1456 = vrot.slane %v1442, %v1455
        %v1457 = vcombine.high %v1433, 0.0
        %v1458 = vcombine.high %v1440, 0.0
        %v1459 = vcombine.high %v1449, 0.0
        %v1460 = vcombine.high %v1456, 0.0
        %v1461 = vcombine.low %v1433, %v1440
        %v1463 = vunpack.c.l.s4 1983009808
        %v1464 = vunpack.c.0.s8 %v1463
        %v1465 = vlaneseq
        %v1466 = vshrl.u32 %v1465, 7
        %v1467 = vsub.s32 %v1464, %v1466
        %v1468 = vrot.slane %v1461, %v1467
        %v1469 = vcombine.low %v1457, %v1458
        %v1471 = vunpack.c.l.s4 1983009808
        %v1472 = vunpack.c.0.s8 %v1471
        %v1473 = vlaneseq
        %v1474 = vshrl.u32 %v1473, 7
        %v1475 = vsub.s32 %v1472, %v1474
        %v1476 = vrot.slane %v1469, %v1475
        %v1477 = vcombine.low %v1449, %v1456
        %v1479 = vunpack.c.l.s4 1983009808
        %v1480 = vunpack.c.0.s8 %v1479
        %v1481 = vlaneseq
        %v1482 = vshrl.u32 %v1481, 7
        %v1483 = vsub.s32 %v1480, %v1482
        %v1484 = vrot.slane %v1477, %v1483
        %v1485 = vcombine.low %v1459, %v1460
        %v1487 = vunpack.c.l.s4 1983009808
        %v1488 = vunpack.c.0.s8 %v1487
        %v1489 = vlaneseq
        %v1490 = vshrl.u32 %v1489, 7
        %v1491 = vsub.s32 %v1488, %v1490
        %v1492 = vrot.slane %v1485, %v1491
        %v1493 = vcombine.low %v1468, %v1476
        %v1494 = vcombine.high %v1468, %v1476
        %v1496 = vunpack.c.l.s4 1934713408
        %v1497 = vunpack.c.0.s8 %v1496
        %v1498 = vlaneseq
        %v1499 = vshrl.u32 %v1498, 7
        %v1500 = vsub.s32 %v1497, %v1499
        %v1501 = vrot.slane %v1493, %v1500
        %v1503 = vunpack.c.l.s4 1934713408
        %v1504 = vunpack.c.0.s8 %v1503
        %v1505 = vlaneseq
        %v1506 = vshrl.u32 %v1505, 7
        %v1507 = vsub.s32 %v1504, %v1506
        %v1508 = vrot.slane %v1494, %v1507
        %v1509 = vcombine.low %v1484, %v1492
        %v1510 = vcombine.high %v1484, %v1492
        %v1512 = vunpack.c.l.s4 1934713408
        %v1513 = vunpack.c.0.s8 %v1512
        %v1514 = vlaneseq
        %v1515 = vshrl.u32 %v1514, 7
        %v1516 = vsub.s32 %v1513, %v1515
        %v1517 = vrot.slane %v1509, %v1516
        %v1519 = vunpack.c.l.s4 1934713408
        %v1520 = vunpack.c.0.s8 %v1519
        %v1521 = vlaneseq
        %v1522 = vshrl.u32 %v1521, 7
        %v1523 = vsub.s32 %v1520, %v1522
        %v1524 = vrot.slane %v1510, %v1523
        %v1525 = vcombine.low %v1501, %v1517
        %v1526 = vcombine.high %v1501, %v1517
        %v1527 = vcombine.low %v1508, %v1524
        %v1528 = vcombine.high %v1508, %v1524
        %1530 = vrot.lane.b32.xlu0 %v1526, 8
        %v1531 = vpop.permute.xlu0 %1530
        %1534 = vrot.lane.b32.xlu0 %v1527, 16
        %v1535 = vpop.permute.xlu0 %1534
        %1538 = vrot.lane.b32.xlu0 %v1528, 24
        %v1539 = vpop.permute.xlu0 %1538
        %v1541 = vsel %vm975, %v1525, %v1531
        %vm1542 = vcmask 130048
        %v1543 = vsel %vm1542, %v1541, %v1535
        %vm1544 = vcmask 195584
        %v1545 = vsel %vm1544, %v1543, %v1539
        %v1546 = vpack.c.bf16 %v1545, %v1545
        %v1547 = vld [vmem:[%s3] sm:$0xf]
        %v1548 = vld [vmem:[%s3 + $0x4] sm:$0xf]
        %v1549 = vld [vmem:[%s3 + $0x8] sm:$0xf]
        %v1550 = vld [vmem:[%s3 + $0xc] sm:$0xf]
        %v1551 = vld [vmem:[%s4] sm:$0x1]
        %v1553 = vlaneseq
        %v1554 = vshrl.u32 %v1553, 7
        %v1555 = vsub.s32 0, %v1554
        %v1556 = vrot.slane %v1551, %v1555
        %v1562 = vunpack.c.l.b16 %v1547
        %v1563 = vunpack.c.l.b16 %v1548
        %v1564 = vunpack.c.l.b16 %v1549
        %v1565 = vunpack.c.l.b16 %v1550
        %v1566 = vpack.c.b16 %v1563, %v1562
        %v1567 = vpack.c.b16 %v1565, %v1564
        %v1571 = vsel %vm477, %v1546, 0
        %1573 = vmatprep.subr.bf16.mxu0 0
        %1574 = vmatpush1.bf16.msra.mxu0 %v1566
        %1575 = vmatprep.subr.bf16.mxu0 0
        %1576 = vmatpush1.bf16.msra.mxu0 %v1567
        %1577 = vmatprep.subr.bf16.mxu0 0
        %1578 = vmatpush1.bf16.msra.mxu0 0
        %1579 = vmatprep.subr.bf16.mxu0 0
        %1580 = vmatpush1.bf16.msra.mxu0 0
        %1581 = vmatprep.subr.bf16.mxu0 0
        %1582 = vmatpush1.bf16.msra.mxu0 0
        %1583 = vmatprep.subr.bf16.mxu0 0
        %1584 = vmatpush1.bf16.msra.mxu0 0
        %1585 = vmatprep.subr.bf16.mxu0 0
        %1586 = vmatpush1.bf16.msra.mxu0 0
        %1587 = vmatprep.subr.bf16.mxu0 0
        %1588 = vmatpush1.bf16.msra.mxu0 0
        %1589 = vmatprep.subr.bf16.mxu0 0
        %1590 = vmatpush1.bf16.msra.mxu0 0
        %1591 = vmatprep.subr.bf16.mxu0 0
        %1592 = vmatpush1.bf16.msra.mxu0 0
        %1593 = vmatprep.subr.bf16.mxu0 0
        %1594 = vmatpush1.bf16.msra.mxu0 0
        %1595 = vmatprep.subr.bf16.mxu0 0
        %1596 = vmatpush1.bf16.msra.mxu0 0
        %1597 = vmatprep.subr.bf16.mxu0 0
        %1598 = vmatpush1.bf16.msra.mxu0 0
        %1599 = vmatprep.subr.bf16.mxu0 0
        %1600 = vmatpush1.bf16.msra.mxu0 0
        %1601 = vmatprep.subr.bf16.mxu0 0
        %1602 = vmatpush1.bf16.msra.mxu0 0
        %1603 = vmatprep.subr.bf16.mxu0 0
        %1604 = vmatpush1.bf16.msra.mxu0 0
        %1605 = vmatprep.mubr.bf16.mxu0 0
        %1606 = vmatmul.mubr.bf16.gmra.mrb[0].mxu0 %v1571
        %v1607 = vpop.f32.mrb[0].mxu0
        %v1608 = vadd.f32 %v1556, %v1607
        %v1609 = vpop.f32.mrb[0].mxu0
        %v1610 = vpop.f32.mrb[0].mxu0
        %v1611 = vpop.f32.mrb[0].mxu0
        %1612 = vdwg.mxu0
        %v1613 = vadd.f32 %v452, %v1608
        %v1614 = vld [vmem:[%s5] sm:$0x1]
        %v1615 = vld [vmem:[%s6] sm:$0x1]
        %v1616 = vsel %vm477, %v1613, 0.0
        %1617 = vadd.xlane.f32.xlu0 %v1616
        %v1618 = vpop.xlane.xlu0 %1617
        %v1619 = vrcp.pop 32.0
        %v1620 = vmul.f32 %v1618, %v1619
        %v1621 = vsub.f32 %v1613, %v1620
        %v1622 = vmul.f32 %v1621, %v1621
        %v1623 = vsel %vm477, %v1622, 0.0
        %1624 = vadd.xlane.f32.xlu0 %v1623
        %v1625 = vpop.xlane.xlu0 %1624
        %v1626 = vmul.f32 %v1625, %v1619
        %v1627 = vadd.f32 %v1626, 1e-05
        %v1628 = vrsqrt.pop %v1627
        %v1629 = vmul.f32 %v1621, %v1628
        %v1631 = vlaneseq
        %v1632 = vshrl.u32 %v1631, 7
        %v1633 = vsub.s32 0, %v1632
        %v1634 = vrot.slane %v1614, %v1633
        %v1636 = vmul.f32 %v1629, %v1634
        %v1638 = vlaneseq
        %v1639 = vshrl.u32 %v1638, 7
        %v1640 = vsub.s32 0, %v1639
        %v1641 = vrot.slane %v1615, %v1640
        %v1643 = vadd.f32 %v1636, %v1641
        %v1644 = vpack.c.bf16 %v1643, %v1643
        %v1645 = vld [vmem:[#allocation2] sm:$0xf]
        %v1646 = vld [vmem:[#allocation2 + $0x4] sm:$0xf]
        %v1647 = vld [vmem:[#allocation2 + $0x8] sm:$0xf]
        %v1648 = vld [vmem:[#allocation2 + $0xc] sm:$0xf]
        %v1649 = vld [vmem:[%s8] sm:$0x1]
        %v1651 = vlaneseq
        %v1652 = vshrl.u32 %v1651, 7
        %v1653 = vsub.s32 0, %v1652
        %v1654 = vrot.slane %v1649, %v1653
        %v1660 = vunpack.c.l.b16 %v1645
        %v1661 = vunpack.c.l.b16 %v1646
        %v1662 = vunpack.c.l.b16 %v1647
        %v1663 = vunpack.c.l.b16 %v1648
        %v1664 = vpack.c.b16 %v1661, %v1660
        %v1665 = vpack.c.b16 %v1663, %v1662
        %v1669 = vsel %vm477, %v1644, 0
        %1671 = vmatprep.subr.bf16.mxu0 0
        %1672 = vmatpush1.bf16.msra.mxu0 %v1664
        %1673 = vmatprep.subr.bf16.mxu0 0
        %1674 = vmatpush1.bf16.msra.mxu0 %v1665
        %1675 = vmatprep.subr.bf16.mxu0 0
        %1676 = vmatpush1.bf16.msra.mxu0 0
        %1677 = vmatprep.subr.bf16.mxu0 0
        %1678 = vmatpush1.bf16.msra.mxu0 0
        %1679 = vmatprep.subr.bf16.mxu0 0
        %1680 = vmatpush1.bf16.msra.mxu0 0
        %1681 = vmatprep.subr.bf16.mxu0 0
        %1682 = vmatpush1.bf16.msra.mxu0 0
        %1683 = vmatprep.subr.bf16.mxu0 0
        %1684 = vmatpush1.bf16.msra.mxu0 0
        %1685 = vmatprep.subr.bf16.mxu0 0
        %1686 = vmatpush1.bf16.msra.mxu0 0
        %1687 = vmatprep.subr.bf16.mxu0 0
        %1688 = vmatpush1.bf16.msra.mxu0 0
        %1689 = vmatprep.subr.bf16.mxu0 0
        %1690 = vmatpush1.bf16.msra.mxu0 0
        %1691 = vmatprep.subr.bf16.mxu0 0
        %1692 = vmatpush1.bf16.msra.mxu0 0
        %1693 = vmatprep.subr.bf16.mxu0 0
        %1694 = vmatpush1.bf16.msra.mxu0 0
        %1695 = vmatprep.subr.bf16.mxu0 0
        %1696 = vmatpush1.bf16.msra.mxu0 0
        %1697 = vmatprep.subr.bf16.mxu0 0
        %1698 = vmatpush1.bf16.msra.mxu0 0
        %1699 = vmatprep.subr.bf16.mxu0 0
        %1700 = vmatpush1.bf16.msra.mxu0 0
        %1701 = vmatprep.subr.bf16.mxu0 0
        %1702 = vmatpush1.bf16.msra.mxu0 0
        %1703 = vmatprep.mubr.bf16.mxu0 0
        %1704 = vmatmul.mubr.bf16.gmra.mrb[0].mxu0 %v1669
        %v1705 = vpop.f32.mrb[0].mxu0
        %v1706 = vadd.f32 %v1654, %v1705
        %v1707 = vpop.f32.mrb[0].mxu0
        %v1708 = vpop.f32.mrb[0].mxu0
        %v1709 = vpop.f32.mrb[0].mxu0
        %1710 = vdwg.mxu0
        %v1711 = vmul.f32 %v1706, %v1706
        %v1712 = vmul.f32 %v1706, %v1711
        %v1713 = vmul.f32 %v1712, 0.044715
        %v1714 = vadd.f32 %v1706, %v1713
        %v1715 = vmul.f32 %v1714, 0.7978846
        %v1716 = vtanh.pop %v1715
        %v1717 = vadd.f32 %v1716, 1.0
        %v1718 = vmul.f32 %v1717, 0.5
        %v1719 = vmul.f32 %v1706, %v1718
        %v1720 = vpack.c.bf16 %v1719, %v1719
        %v1721 = vld [vmem:[%s9] sm:$0xf]
        %v1722 = vld [vmem:[%s9 + $0x4] sm:$0xf]
        %v1723 = vld [vmem:[%s9 + $0x8] sm:$0xf]
        %v1724 = vld [vmem:[%s9 + $0xc] sm:$0xf]
        %v1725 = vld [vmem:[%s9 + $0x10] sm:$0xf]
        %v1726 = vld [vmem:[%s9 + $0x14] sm:$0xf]
        %v1727 = vld [vmem:[%s9 + $0x18] sm:$0xf]
        %v1728 = vld [vmem:[%s9 + $0x1c] sm:$0xf]
        %v1729 = vld [vmem:[%s10] sm:$0x1]
        %v1731 = vlaneseq
        %v1732 = vshrl.u32 %v1731, 7
        %v1733 = vsub.s32 0, %v1732
        %v1734 = vrot.slane %v1729, %v1733
        %v1744 = vunpack.c.l.b16 %v1721
        %v1745 = vunpack.c.l.b16 %v1722
        %v1746 = vunpack.c.l.b16 %v1723
        %v1747 = vunpack.c.l.b16 %v1724
        %v1748 = vunpack.c.l.b16 %v1725
        %v1749 = vunpack.c.l.b16 %v1726
        %v1750 = vunpack.c.l.b16 %v1727
        %v1751 = vunpack.c.l.b16 %v1728
        %v1752 = vpack.c.b16 %v1745, %v1744
        %v1753 = vpack.c.b16 %v1747, %v1746
        %v1754 = vpack.c.b16 %v1749, %v1748
        %v1755 = vpack.c.b16 %v1751, %v1750
        %vm1760 = vcmask 523264
        %v1762 = vsel %vm1760, %v1720, 0
        %1764 = vmatprep.subr.bf16.mxu0 0
        %1765 = vmatpush1.bf16.msra.mxu0 %v1752
        %1766 = vmatprep.subr.bf16.mxu0 0
        %1767 = vmatpush1.bf16.msra.mxu0 %v1753
        %1768 = vmatprep.subr.bf16.mxu0 0
        %1769 = vmatpush1.bf16.msra.mxu0 %v1754
        %1770 = vmatprep.subr.bf16.mxu0 0
        %1771 = vmatpush1.bf16.msra.mxu0 %v1755
        %1772 = vmatprep.subr.bf16.mxu0 0
        %1773 = vmatpush1.bf16.msra.mxu0 0
        %1774 = vmatprep.subr.bf16.mxu0 0
        %1775 = vmatpush1.bf16.msra.mxu0 0
        %1776 = vmatprep.subr.bf16.mxu0 0
        %1777 = vmatpush1.bf16.msra.mxu0 0
        %1778 = vmatprep.subr.bf16.mxu0 0
        %1779 = vmatpush1.bf16.msra.mxu0 0
        %1780 = vmatprep.subr.bf16.mxu0 0
        %1781 = vmatpush1.bf16.msra.mxu0 0
        %1782 = vmatprep.subr.bf16.mxu0 0
        %1783 = vmatpush1.bf16.msra.mxu0 0
        %1784 = vmatprep.subr.bf16.mxu0 0
        %1785 = vmatpush1.bf16.msra.mxu0 0
        %1786 = vmatprep.subr.bf16.mxu0 0
        %1787 = vmatpush1.bf16.msra.mxu0 0
        %1788 = vmatprep.subr.bf16.mxu0 0
        %1789 = vmatpush1.bf16.msra.mxu0 0
        %1790 = vmatprep.subr.bf16.mxu0 0
        %1791 = vmatpush1.bf16.msra.mxu0 0
        %1792 = vmatprep.subr.bf16.mxu0 0
        %1793 = vmatpush1.bf16.msra.mxu0 0
        %1794 = vmatprep.subr.bf16.mxu0 0
        %1795 = vmatpush1.bf16.msra.mxu0 0
        %1796 = vmatprep.mubr.bf16.mxu0 0
        %1797 = vmatmul.mubr.bf16.gmra.mrb[0].mxu0 %v1762
        %v1798 = vpop.f32.mrb[0].mxu0
        %v1799 = vadd.f32 %v1734, %v1798
        %v1800 = vpop.f32.mrb[0].mxu0
        %v1801 = vpop.f32.mrb[0].mxu0
        %v1802 = vpop.f32.mrb[0].mxu0
        %1803 = vdwg.mxu0
        %v1804 = vadd.f32 %v1643, %v1799
        %v1805 = vld [vmem:[%s11] sm:$0x1]
        %v1806 = vld [vmem:[%s12] sm:$0x1]
        %v1807 = vsel %vm477, %v1804, 0.0
        %1808 = vadd.xlane.f32.xlu0 %v1807
        %v1809 = vpop.xlane.xlu0 %1808
        %v1810 = vmul.f32 %v1809, %v1619
        %v1811 = vsub.f32 %v1804, %v1810
        %v1812 = vmul.f32 %v1811, %v1811
        %v1813 = vsel %vm477, %v1812, 0.0
        %1814 = vadd.xlane.f32.xlu0 %v1813
        %v1815 = vpop.xlane.xlu0 %1814
        %v1816 = vmul.f32 %v1815, %v1619
        %v1817 = vadd.f32 %v1816, 1e-05
        %v1818 = vrsqrt.pop %v1817
        %v1819 = vmul.f32 %v1811, %v1818
        %v1821 = vlaneseq
        %v1822 = vshrl.u32 %v1821, 7
        %v1823 = vsub.s32 0, %v1822
        %v1824 = vrot.slane %v1805, %v1823
        %v1826 = vmul.f32 %v1819, %v1824
        %v1828 = vlaneseq
        %v1829 = vshrl.u32 %v1828, 7
        %v1830 = vsub.s32 0, %v1829
        %v1831 = vrot.slane %v1806, %v1830
        %v1833 = vadd.f32 %v1826, %v1831
        %1834 = vst.msk [vmem:[%s446] sm:$0xff] %vm477, %v1833
        %s1835 = sand.u32 %s314, 1
        %s1836 = scalar_lea.sflag [#allocation4], %s1835
        %s1837 = sand.u32 %s314, 1
        %s1838 = smul.addr %s1837, 8
        %s1839 = scalar_lea.vmem [#allocation5], %s1838
        // Predicated region
        $region77: #{_vit_block_call.1} parent=71 // pred_check
          %p1840 = pneg %p324
        $region78: #{_vit_block_call.1} parent=71 // pred_check_branch
          %1842 = sbr.rel (%p1840) target = $region80
        $region79: #{_vit_block_call.1} parent=71 // pred_region
          %s1844 = ssub.s32 128, 128
          %1845 = vsyncadd %s1836, %s1844
          %s1846 = smul.addr %s28, 128
          %s1847 = scalar_lea.hbm %s13, %s1846
          %s1849 = sshll.u32 %s1839, 4
          %s1850 = int_to_ptr.vmem [resolvable:$true] %s1849
          %1852 = dma.vmem_to_hbm [thread:$0]  %s1850, 128, %s1847, %s1836
        $region80: #{_vit_block_call.1} parent=71 // pred_fallthru
          _
      $region72: #{_vit_block_call.1} parent=5 // pred_fallthru
        _
      %p1853 = scmp.le.s32.totalorder 2, %s23
      // Predicated region
      $region81: #{_vit_block_call.1} parent=5 // pred_check
        %p1854 = pneg %p1853
      $region82: #{_vit_block_call.1} parent=5 // pred_check_branch
        %1856 = sbr.rel (%p1854) target = $region84
      $region83: #{_vit_block_call.1} parent=5 // pred_region
        %s1857 = ssub.s32 %s23, 2
        // Predicated region
        $region85: #{_vit_block_call.1} parent=83 // pred_check
          %p1858 = pneg %p330
        $region86: #{_vit_block_call.1} parent=83 // pred_check_branch
          %1860 = sbr.rel (%p1858) target = $region88
        $region87: #{_vit_block_call.1} parent=83 // pred_region
          %s1861 = sand.u32 %s315, 1
          %s1862 = scalar_lea.sflag [#allocation4], %s1861
          %s1863 = sand.u32 %s315, 1
          %s1864 = smul.addr %s1863, 8
          %s1865 = scalar_lea.vmem [#allocation5], %s1864
          %1866 = dma.done %s1862, 128
        $region88: #{_vit_block_call.1} parent=83 // pred_fallthru
          _
      $region84: #{_vit_block_call.1} parent=5 // pred_fallthru
        _
    $region6: #{_vit_block_call.1} parent=1 // loop_footer
      %s27 = sadd.s32 1, %s23
    $region7: #{_vit_block_call.1} parent=1 // loop_footer_branch
      %22 = sbr.rel target = $region3
    $region8: #{_vit_block_call.1} parent=1 // loop_exit
      _
    %1867 = vsyncpa [#allocation3], 1
    %s1868 = scalar_lea.sflag [#allocation3], 1
    %1869 = vsyncpa %s1868, 1
    %1870 = vsyncpa [#allocation4], 1
    %s1871 = scalar_lea.sflag [#allocation4], 1
    %1872 = vsyncpa %s1871, 1

</llo_original>
